<compile_context>
chip_gen: v7x
topology: tpu7x:2x2x1
jax: 0.10.0
libtpu: 0.0.40
codegen_flags: <defaults>
</compile_context>

<pallas_src>
import math

import jax
import jax.numpy as jnp
from jax.experimental import pallas as pl
from jax.experimental.pallas import tpu as pltpu


# ----------------------------------------------------------------------------
# Kernel
# ----------------------------------------------------------------------------
def _make_kernel(TH, W, Cin, Cout, K, dil_x, with_h, mm_dtype):
    """leaky_relu(tanh(conv_x(x) [+ conv_h(h)] + b)) for one (TH x W) tile,
    as a single fused im2col matmul."""
    rows = TH * W

    def taps(tile_f32, dil):
        # tile_f32: (TH + (K-1)*dil, W + (K-1)*dil, C) value already in vregs.
        return [tile_f32[kh * dil:kh * dil + TH, kw * dil:kw * dil + W, :]
                for kh in range(K) for kw in range(K)]

    def body(pieces, w_ref, b_ref, o_ref):
        # im2col patch built ONCE per tile.  The trailing-dim concat is the
        # only real relayout of the patch build; the reshape merges leading
        # dims only (layout preserving).
        patch = jnp.concatenate(pieces, axis=-1)          # (TH, W, CK) f32
        patch = patch.reshape(rows, patch.shape[-1])
        patch = patch.astype(mm_dtype)                    # bf16 MXU operand
        acc = jnp.dot(patch, w_ref[...],
                      preferred_element_type=jnp.float32)  # (rows, Cout) f32
        acc = acc + b_ref[...]                             # pre-summed bias
        act = jnp.tanh(acc)                                # EUP, f32
        act = jnp.where(act >= 0, act, 0.2 * act)          # LeakyReLU(0.2)
        # Lane-pack (rows, Cout) -> (TH, W*Cout) so the store is unmasked
        # (last dim = 128 lanes for the demo shapes).  Done with static
        # slices + one concat (robust lowering) instead of a minor-dim
        # reshape.
        act = act.reshape(TH, W, Cout)
        dense = jnp.concatenate([act[:, w, :] for w in range(W)], axis=-1)
        o_ref[...] = dense.astype(o_ref.dtype)

    if with_h:
        def kernel(xt_ref, ht_ref, w_ref, b_ref, o_ref):
            x = xt_ref[...].astype(jnp.float32)
            h = ht_ref[...].astype(jnp.float32)
            body(taps(x, dil_x) + taps(h, 1), w_ref, b_ref, o_ref)
        return kernel

    def kernel(xt_ref, w_ref, b_ref, o_ref):
        x = xt_ref[...].astype(jnp.float32)
        body(taps(x, dil_x), w_ref, b_ref, o_ref)
    return kernel


def _conv_rnn_fused(x_tiles, h_tiles, w_comb, b_comb, *, TH, W, Cin, Cout, K,
                    dil_x):
    """Gridded pallas_call: one grid step per (batch, row-tile)."""
    NT, THx, Wpx, _ = x_tiles.shape
    with_h = h_tiles is not None
    kernel = _make_kernel(TH, W, Cin, Cout, K, dil_x, with_h,
                          mm_dtype=w_comb.dtype)

    args = [x_tiles]
    in_specs = [pl.BlockSpec((None, THx, Wpx, Cin), lambda i: (i, 0, 0, 0))]
    if with_h:
        _, THh, Wph, _ = h_tiles.shape
        args.append(h_tiles)
        in_specs.append(pl.BlockSpec((None, THh, Wph, Cout),
                                     lambda i: (i, 0, 0, 0)))
    args += [w_comb, b_comb]
    in_specs += [pl.BlockSpec(w_comb.shape, lambda i: (0, 0)),
                 pl.BlockSpec(b_comb.shape, lambda i: (0, 0))]
    out_specs = pl.BlockSpec((None, TH, W * Cout), lambda i: (i, 0, 0))

    # Explicit VMEM budget: double-buffered in/out tiles + resident weights +
    # in-kernel patch / accumulator temporaries, with 2x headroom.
    bpe_in = x_tiles.dtype.itemsize
    need = 2 * THx * Wpx * Cin * bpe_in + 2 * TH * W * Cout * 4
    if with_h:
        need += 2 * h_tiles.shape[1] * h_tiles.shape[2] * Cout * bpe_in
    need += w_comb.size * w_comb.dtype.itemsize + b_comb.size * 4
    need += TH * W * (w_comb.shape[0] * 6 + Cout * 8)
    vmem_limit = int(min(64 * 2 ** 20, max(8 * 2 ** 20, 2 * need)))

    return pl.pallas_call(
        kernel,
        out_shape=jax.ShapeDtypeStruct((NT, TH, W * Cout), jnp.float32),
        grid=(NT,),
        in_specs=in_specs,
        out_specs=out_specs,
        compiler_params=pltpu.CompilerParams(
            dimension_semantics=("parallel",),      # megacore-shardable
            vmem_limit_bytes=vmem_limit),
    )(*args)


# ----------------------------------------------------------------------------
# Wrapper helpers
# ----------------------------------------------------------------------------
def _pick_tile_h(H, W, K, Cin, Cout, max_rows=1024, max_patch_bytes=2 << 20):
    """Largest divisor of H whose (TH*W)-row im2col patch stays comfortably
    inside VMEM so the tile pipeline double-buffers cheaply."""
    best = 1
    for th in range(1, H + 1):
        if H % th:
            continue
        rows = th * W
        patch_bytes = rows * K * K * (Cin + Cout) * 4
        if rows <= max_rows and patch_bytes <= max_patch_bytes:
            best = th
    return best


def _row_tiles(padded, TH, halo):
    """(N, H+halo, Wp, C) -> (N*nT, TH+halo, Wp, C).  Overlapping row windows
    are materialized once in HBM (halo duplication) so the kernel can use
    plain Blocked BlockSpecs on non-overlapping blocks."""
    N, Hp, Wp, C = padded.shape
    H = Hp - halo
    nT = H // TH
    if nT == 1:
        return padded
    tiles = [padded[:, t * TH: t * TH + TH + halo] for t in range(nT)]
    return jnp.stack(tiles, axis=1).reshape(N * nT, TH + halo, Wp, C)


# ----------------------------------------------------------------------------
# Module
# ----------------------------------------------------------------------------
class ConvRNNPallas:
    """Pallas-TPU implementation of the PyTorch ConvRNN forward pass."""

    def __init__(self, inp_dim, oup_dim, kernel, dilation, key,
                 compute_dtype=jnp.bfloat16):
        self.inp_dim = inp_dim
        self.oup_dim = oup_dim
        self.kernel = kernel
        self.dilation = dilation
        self.compute_dtype = compute_dtype
        self.pad_x = int(dilation * (kernel - 1) / 2)
        self.pad_h = int((kernel - 1) / 2)
        # 'same'-style output only holds for odd kernels (as the PyTorch
        # module implicitly assumes for the recurrent add to be well defined).
        assert 2 * self.pad_x == dilation * (kernel - 1), "odd kernel required"
        assert 2 * self.pad_h == kernel - 1, "odd kernel required"

        k1, k2, k3, k4 = jax.random.split(key, 4)
        bx = 1.0 / math.sqrt(inp_dim * kernel * kernel)
        bh = 1.0 / math.sqrt(oup_dim * kernel * kernel)
        # Weights stored in HWIO (K, K, Cin, Cout), f32 masters.
        self.wx = jax.random.uniform(k1, (kernel, kernel, inp_dim, oup_dim),
                                     jnp.float32, -bx, bx)
        self.bx = jax.random.uniform(k2, (oup_dim,), jnp.float32, -bx, bx)
        self.wh = jax.random.uniform(k3, (kernel, kernel, oup_dim, oup_dim),
                                     jnp.float32, -bh, bh)
        self.bh = jax.random.uniform(k4, (oup_dim,), jnp.float32, -bh, bh)

        # Fused kernel operands (contraction row order: kh, kw, c; x taps
        # first, then h taps), bf16 for the MXU; bias pre-summed once.
        cd = compute_dtype
        wxf = self.wx.reshape(kernel * kernel * inp_dim, oup_dim).astype(cd)
        whf = self.wh.reshape(kernel * kernel * oup_dim, oup_dim).astype(cd)
        self._w_x = wxf
        self._b_x = self.bx.reshape(1, oup_dim).astype(jnp.float32)
        self._w_xh = jnp.concatenate([wxf, whf], axis=0)
        self._b_xh = (self.bx + self.bh).reshape(1, oup_dim).astype(jnp.float32)

    # ---- forward ---------------------------------------------------------
    def forward_nhwc(self, x_nhwc, h_nhwc=None):
        """NHWC fast path: use inside a recurrent loop to keep the state in
        NHWC and avoid per-step NCHW<->NHWC transposes."""
        out = self._forward(x_nhwc, h_nhwc)
        return out, out

    def __call__(self, x_nchw, h_nchw=None):
        x = jnp.transpose(x_nchw, (0, 2, 3, 1))                 # NCHW -> NHWC
        h = None if h_nchw is None else jnp.transpose(h_nchw, (0, 2, 3, 1))
        out = self._forward(x, h)
        out = jnp.transpose(out, (0, 3, 1, 2))                  # NHWC -> NCHW
        return out, out

    def _forward(self, x, h):
        N, H, W, Cin = x.shape
        assert Cin == self.inp_dim
        K, d, Cout = self.kernel, self.dilation, self.oup_dim
        cd = self.compute_dtype
        TH = _pick_tile_h(H, W, K, Cin, Cout)

        xp = jnp.pad(x.astype(cd),
                     ((0, 0), (self.pad_x,) * 2, (self.pad_x,) * 2, (0, 0)))
        x_tiles = _row_tiles(xp, TH, (K - 1) * d)
        if h is None:
            h_tiles, w_c, b_c = None, self._w_x, self._b_x
        else:
            hp = jnp.pad(h.astype(cd),
                         ((0, 0), (self.pad_h,) * 2, (self.pad_h,) * 2,
                          (0, 0)))
            h_tiles = _row_tiles(hp, TH, K - 1)
            w_c, b_c = self._w_xh, self._b_xh

        out = _conv_rnn_fused(x_tiles, h_tiles, w_c, b_c, TH=TH, W=W, Cin=Cin,
                              Cout=Cout, K=K, dil_x=d)
        return out.reshape(N, H, W, Cout)

    # ---- pure-JAX reference (f32) -----------------------------------------
    def reference(self, x_nchw, h_nchw=None):
        x = jnp.transpose(x_nchw, (0, 2, 3, 1))

        def conv(inp, w_hwio, b, pad, dil):
            y = jax.lax.conv_general_dilated(
                inp, w_hwio, window_strides=(1, 1),
                padding=[(pad, pad), (pad, pad)], rhs_dilation=(dil, dil),
                dimension_numbers=('NHWC', 'HWIO', 'NHWC'))
            return y + b.reshape(1, 1, 1, -1)

        acc = conv(x, self.wx, self.bx, self.pad_x, self.dilation)
        if h_nchw is not None:
            h = jnp.transpose(h_nchw, (0, 2, 3, 1))
            acc = acc + conv(h, self.wh, self.bh, self.pad_h, 1)
        v = jnp.tanh(acc)
        v = jnp.where(v >= 0, v, 0.2 * v)
        return jnp.transpose(v, (0, 3, 1, 2))


# ----------------------------------------------------------------------------
if __name__ == "__main__":
    key = jax.random.PRNGKey(0)
    kparams, kx = jax.random.split(key)

    # batch=2, inp_dim=4, oup_dim=8, spatial=16x16, K=3, dilation=2
    model = ConvRNNPallas(inp_dim=4, oup_dim=8, kernel=3, dilation=2,
                          key=kparams)
    x = jax.random.normal(kx, (2, 4, 16, 16), jnp.float32)

    h1, _ = model(x)            # step 1: h is None
    h2, _ = model(x, h1)        # step 2: recurrent path (conv_x(x)+conv_h(h))
    jax.block_until_ready(h2)

    # Correctness vs. pure-JAX f32 reference.  The kernel uses bf16 matmul
    # operands (f32 accumulation + f32 elementwise), so tolerance reflects
    # bf16 input rounding (~1e-2 worst case on tanh-bounded outputs).
    r1 = model.reference(x, None)
    r2 = model.reference(x, h1)
    assert jnp.allclose(h1, r1, atol=3e-2, rtol=3e-2), "step-1 mismatch"
    assert jnp.allclose(h2, r2, atol=3e-2, rtol=3e-2), "step-2 mismatch"

    print("KERNEL_OK")
</pallas_src>

<mosaic_0001>
module attributes {stable_mosaic.version = 11 : i64} {
  func.func @kernel(%arg0: i32, %arg1: memref<1x20x20x4xbf16, #tpu.memory_space<vmem>>, %arg2: memref<36x8xbf16, #tpu.memory_space<vmem>>, %arg3: memref<1x8xf32, #tpu.memory_space<vmem>>, %arg4: memref<1x16x128xf32, #tpu.memory_space<vmem>>) attributes {dimension_semantics = [#tpu.dimension_semantics<parallel>], iteration_bounds = array<i64: 2>, scalar_prefetch = 0 : i64, scratch_operands = 0 : i64, tpu.core_type = #tpu.core_type<tc>, window_params = [{transform_indices = @transform_0, window_bounds = array<i64: 1, 20, 20, 4>}, {pipeline_mode = #tpu.pipeline_mode<synchronous>, transform_indices = @transform_1, window_bounds = array<i64: 36, 8>}, {pipeline_mode = #tpu.pipeline_mode<synchronous>, transform_indices = @transform_2, window_bounds = array<i64: 1, 8>}, {transform_indices = @transform_3, window_bounds = array<i64: 1, 16, 128>}]} {
    %c0 = arith.constant 0 : index
    %c0_0 = arith.constant 0 : index
    %c0_1 = arith.constant 0 : index
    %c0_2 = arith.constant 0 : index
    %0 = vector.load %arg1[%c0, %c0_0, %c0_1, %c0_2] : memref<1x20x20x4xbf16, #tpu.memory_space<vmem>>, vector<1x20x20x4xbf16>
    %1 = vector.shape_cast %0 : vector<1x20x20x4xbf16> to vector<20x20x4xbf16>
    %2 = arith.extf %1 : vector<20x20x4xbf16> to vector<20x20x4xf32>
    %3 = vector.extract_strided_slice %2 {offsets = [0, 0, 0], sizes = [16, 16, 4], strides = [1, 1, 1]} : vector<20x20x4xf32> to vector<16x16x4xf32>
    %4 = vector.extract_strided_slice %2 {offsets = [0, 2, 0], sizes = [16, 16, 4], strides = [1, 1, 1]} : vector<20x20x4xf32> to vector<16x16x4xf32>
    %5 = vector.extract_strided_slice %2 {offsets = [0, 4, 0], sizes = [16, 16, 4], strides = [1, 1, 1]} : vector<20x20x4xf32> to vector<16x16x4xf32>
    %6 = vector.extract_strided_slice %2 {offsets = [2, 0, 0], sizes = [16, 16, 4], strides = [1, 1, 1]} : vector<20x20x4xf32> to vector<16x16x4xf32>
    %7 = vector.extract_strided_slice %2 {offsets = [2, 2, 0], sizes = [16, 16, 4], strides = [1, 1, 1]} : vector<20x20x4xf32> to vector<16x16x4xf32>
    %8 = vector.extract_strided_slice %2 {offsets = [2, 4, 0], sizes = [16, 16, 4], strides = [1, 1, 1]} : vector<20x20x4xf32> to vector<16x16x4xf32>
    %9 = vector.extract_strided_slice %2 {offsets = [4, 0, 0], sizes = [16, 16, 4], strides = [1, 1, 1]} : vector<20x20x4xf32> to vector<16x16x4xf32>
    %10 = vector.extract_strided_slice %2 {offsets = [4, 2, 0], sizes = [16, 16, 4], strides = [1, 1, 1]} : vector<20x20x4xf32> to vector<16x16x4xf32>
    %11 = vector.extract_strided_slice %2 {offsets = [4, 4, 0], sizes = [16, 16, 4], strides = [1, 1, 1]} : vector<20x20x4xf32> to vector<16x16x4xf32>
    %12 = tpu.concatenate %3, %4, %5, %6, %7, %8, %9, %10, %11 in 2 : vector<16x16x4xf32>, vector<16x16x4xf32>, vector<16x16x4xf32>, vector<16x16x4xf32>, vector<16x16x4xf32>, vector<16x16x4xf32>, vector<16x16x4xf32>, vector<16x16x4xf32>, vector<16x16x4xf32> -> vector<16x16x36xf32>
    %13 = vector.shape_cast %12 : vector<16x16x36xf32> to vector<256x36xf32>
    %14 = arith.truncf %13 : vector<256x36xf32> to vector<256x36xbf16>
    %c0_3 = arith.constant 0 : index
    %c0_4 = arith.constant 0 : index
    %15 = vector.load %arg2[%c0_3, %c0_4] : memref<36x8xbf16, #tpu.memory_space<vmem>>, vector<36x8xbf16>
    %cst = arith.constant dense<0.000000e+00> : vector<256x8xf32>
    %16 = tpu.matmul %14, %15, %cst {dimension_numbers = #tpu.dot_dimension_numbers<[1], [0], [0], [1], [0, 0, 1, 1], [], []>} : vector<256x36xbf16>, vector<36x8xbf16>, vector<256x8xf32> -> vector<256x8xf32>
    %c0_5 = arith.constant 0 : index
    %c0_6 = arith.constant 0 : index
    %17 = vector.load %arg3[%c0_5, %c0_6] : memref<1x8xf32, #tpu.memory_space<vmem>>, vector<1x8xf32>
    %18 = vector.broadcast %17 : vector<1x8xf32> to vector<256x8xf32>
    %19 = arith.addf %16, %18 : vector<256x8xf32>
    %20 = math.tanh %19 : vector<256x8xf32>
    %cst_7 = arith.constant 0.000000e+00 : f32
    %21 = vector.broadcast %cst_7 : f32 to vector<256x8xf32>
    %22 = arith.cmpf oge, %20, %21 : vector<256x8xf32>
    %cst_8 = arith.constant 2.000000e-01 : f32
    %23 = vector.broadcast %cst_8 : f32 to vector<256x8xf32>
    %24 = arith.mulf %23, %20 : vector<256x8xf32>
    %25 = arith.select %22, %20, %24 : vector<256x8xi1>, vector<256x8xf32>
    %26 = vector.shape_cast %25 : vector<256x8xf32> to vector<16x16x8xf32>
    %27 = vector.extract_strided_slice %26 {offsets = [0, 0, 0], sizes = [16, 1, 8], strides = [1, 1, 1]} : vector<16x16x8xf32> to vector<16x1x8xf32>
    %28 = vector.shape_cast %27 : vector<16x1x8xf32> to vector<16x8xf32>
    %29 = vector.extract_strided_slice %26 {offsets = [0, 1, 0], sizes = [16, 1, 8], strides = [1, 1, 1]} : vector<16x16x8xf32> to vector<16x1x8xf32>
    %30 = vector.shape_cast %29 : vector<16x1x8xf32> to vector<16x8xf32>
    %31 = vector.extract_strided_slice %26 {offsets = [0, 2, 0], sizes = [16, 1, 8], strides = [1, 1, 1]} : vector<16x16x8xf32> to vector<16x1x8xf32>
    %32 = vector.shape_cast %31 : vector<16x1x8xf32> to vector<16x8xf32>
    %33 = vector.extract_strided_slice %26 {offsets = [0, 3, 0], sizes = [16, 1, 8], strides = [1, 1, 1]} : vector<16x16x8xf32> to vector<16x1x8xf32>
    %34 = vector.shape_cast %33 : vector<16x1x8xf32> to vector<16x8xf32>
    %35 = vector.extract_strided_slice %26 {offsets = [0, 4, 0], sizes = [16, 1, 8], strides = [1, 1, 1]} : vector<16x16x8xf32> to vector<16x1x8xf32>
    %36 = vector.shape_cast %35 : vector<16x1x8xf32> to vector<16x8xf32>
    %37 = vector.extract_strided_slice %26 {offsets = [0, 5, 0], sizes = [16, 1, 8], strides = [1, 1, 1]} : vector<16x16x8xf32> to vector<16x1x8xf32>
    %38 = vector.shape_cast %37 : vector<16x1x8xf32> to vector<16x8xf32>
    %39 = vector.extract_strided_slice %26 {offsets = [0, 6, 0], sizes = [16, 1, 8], strides = [1, 1, 1]} : vector<16x16x8xf32> to vector<16x1x8xf32>
    %40 = vector.shape_cast %39 : vector<16x1x8xf32> to vector<16x8xf32>
    %41 = vector.extract_strided_slice %26 {offsets = [0, 7, 0], sizes = [16, 1, 8], strides = [1, 1, 1]} : vector<16x16x8xf32> to vector<16x1x8xf32>
    %42 = vector.shape_cast %41 : vector<16x1x8xf32> to vector<16x8xf32>
    %43 = vector.extract_strided_slice %26 {offsets = [0, 8, 0], sizes = [16, 1, 8], strides = [1, 1, 1]} : vector<16x16x8xf32> to vector<16x1x8xf32>
    %44 = vector.shape_cast %43 : vector<16x1x8xf32> to vector<16x8xf32>
    %45 = vector.extract_strided_slice %26 {offsets = [0, 9, 0], sizes = [16, 1, 8], strides = [1, 1, 1]} : vector<16x16x8xf32> to vector<16x1x8xf32>
    %46 = vector.shape_cast %45 : vector<16x1x8xf32> to vector<16x8xf32>
    %47 = vector.extract_strided_slice %26 {offsets = [0, 10, 0], sizes = [16, 1, 8], strides = [1, 1, 1]} : vector<16x16x8xf32> to vector<16x1x8xf32>
    %48 = vector.shape_cast %47 : vector<16x1x8xf32> to vector<16x8xf32>
    %49 = vector.extract_strided_slice %26 {offsets = [0, 11, 0], sizes = [16, 1, 8], strides = [1, 1, 1]} : vector<16x16x8xf32> to vector<16x1x8xf32>
    %50 = vector.shape_cast %49 : vector<16x1x8xf32> to vector<16x8xf32>
    %51 = vector.extract_strided_slice %26 {offsets = [0, 12, 0], sizes = [16, 1, 8], strides = [1, 1, 1]} : vector<16x16x8xf32> to vector<16x1x8xf32>
    %52 = vector.shape_cast %51 : vector<16x1x8xf32> to vector<16x8xf32>
    %53 = vector.extract_strided_slice %26 {offsets = [0, 13, 0], sizes = [16, 1, 8], strides = [1, 1, 1]} : vector<16x16x8xf32> to vector<16x1x8xf32>
    %54 = vector.shape_cast %53 : vector<16x1x8xf32> to vector<16x8xf32>
    %55 = vector.extract_strided_slice %26 {offsets = [0, 14, 0], sizes = [16, 1, 8], strides = [1, 1, 1]} : vector<16x16x8xf32> to vector<16x1x8xf32>
    %56 = vector.shape_cast %55 : vector<16x1x8xf32> to vector<16x8xf32>
    %57 = vector.extract_strided_slice %26 {offsets = [0, 15, 0], sizes = [16, 1, 8], strides = [1, 1, 1]} : vector<16x16x8xf32> to vector<16x1x8xf32>
    %58 = vector.shape_cast %57 : vector<16x1x8xf32> to vector<16x8xf32>
    %59 = tpu.concatenate %28, %30, %32, %34, %36, %38, %40, %42, %44, %46, %48, %50, %52, %54, %56, %58 in 1 : vector<16x8xf32>, vector<16x8xf32>, vector<16x8xf32>, vector<16x8xf32>, vector<16x8xf32>, vector<16x8xf32>, vector<16x8xf32>, vector<16x8xf32>, vector<16x8xf32>, vector<16x8xf32>, vector<16x8xf32>, vector<16x8xf32>, vector<16x8xf32>, vector<16x8xf32>, vector<16x8xf32>, vector<16x8xf32> -> vector<16x128xf32>
    %c0_9 = arith.constant 0 : index
    %c0_10 = arith.constant 0 : index
    %c0_11 = arith.constant 0 : index
    %60 = vector.load %arg4[%c0_9, %c0_10, %c0_11] : memref<1x16x128xf32, #tpu.memory_space<vmem>>, vector<1x16x128xf32>
    %61 = vector.shape_cast %60 : vector<1x16x128xf32> to vector<16x128xf32>
    %62 = vector.shape_cast %59 : vector<16x128xf32> to vector<1x16x128xf32>
    tpu.vector_store %arg4[%c0_9, %c0_10, %c0_11], %62 {strides = array<i32>} : memref<1x16x128xf32, #tpu.memory_space<vmem>>, vector<1x16x128xf32>,
    return
  }
  func.func @transform_0(%arg0: i32) -> (i32, i32, i32, i32) {
    %c0_i32 = arith.constant 0 : i32
    %c0_i32_0 = arith.constant 0 : i32
    %c0_i32_1 = arith.constant 0 : i32
    %c0_i32_2 = arith.constant 0 : i32
    return %arg0, %c0_i32, %c0_i32_0, %c0_i32_1 : i32, i32, i32, i32
  }
  func.func @transform_1(%arg0: i32) -> (i32, i32) {
    %c0_i32 = arith.constant 0 : i32
    %c0_i32_0 = arith.constant 0 : i32
    %c0_i32_1 = arith.constant 0 : i32
    return %c0_i32, %c0_i32_0 : i32, i32
  }
  func.func @transform_2(%arg0: i32) -> (i32, i32) {
    %c0_i32 = arith.constant 0 : i32
    %c0_i32_0 = arith.constant 0 : i32
    %c0_i32_1 = arith.constant 0 : i32
    return %c0_i32, %c0_i32_0 : i32, i32
  }
  func.func @transform_3(%arg0: i32) -> (i32, i32, i32) {
    %c0_i32 = arith.constant 0 : i32
    %c0_i32_0 = arith.constant 0 : i32
    %c0_i32_1 = arith.constant 0 : i32
    return %arg0, %c0_i32, %c0_i32_0 : i32, i32, i32
  }
}

</mosaic_0001>

<llo_original>
// kernel: tpu_custom_call.1
$region0: #{tpu_custom_call.1}
  #allocation0 [shape = 'u32[]', space=smem, size = 0x4, offset = 0x4, fixed_abs, tag = 'smem constant byte address 0x4 - core index']
  #allocation1 [shape = 'u32[144,128]{1,0:T(1,128)}', space=vmem, size = 0x12000, scoped, tag = 'internal scratch']
  %s0 = inlined_call_operand.vmem [shape: bf16[2,20,20,4], index: 0, kind: input, shape index: {}]
  %s1 = inlined_call_operand.vmem [shape: bf16[36,8], index: 1, kind: input, shape index: {}]
  %s2 = inlined_call_operand.vmem [shape: f32[1,8], index: 2, kind: input, shape index: {}]
  %s3 = inlined_call_operand.hbm [shape: f32[2,16,128], index: 3, kind: output, shape index: {}]
  %s4 = sld [smem:[#allocation0]]
  $region45: #{tpu_custom_call.1} parent=0
    _
  %s6 = ssub.s32 1, %s4
  %s7 = scalar_select 0, %s6, %s4
  $region1: #{tpu_custom_call.1} parent=0
    #allocation2 [shape = 'u8[16384]{0}', space=vmem, size = 0x4000, scoped, tag = 'output window, operand 0']
    #allocation3 [shape = 's32[2]{0}', space=sflag, size = 0x8, scoped, tag = 'scoped memory for tpu_custom_call.1']
    %8 = vsyncpa [#allocation3], 0
    %s9 = scalar_lea.sflag [#allocation3], 1
    %10 = vsyncpa %s9, 0
    loop: start=0, step=1, limit=4
    $region2: #{tpu_custom_call.1} parent=1 // loop_pre_header
      _
    $region3: #{tpu_custom_call.1} parent=1 // loop_header
      %s12 = sphi 0, %s16
      %p13 = scmp.ge.s32.totalorder %s12, 4
      %s22 = sphi 0, %s24
      %s25 = sphi 0, %s22
      %s26 = sphi 0, %s25
      %s42 = sphi 0, %s26
      %s46 = sphi 0, %s46
      %s48 = sphi 0, %s46
      %s49 = sphi 0, %s48
      %s63 = sphi 0, %s49
      %s67 = sphi 0, %s67
      %s69 = sphi 0, %s67
      %s70 = sphi 0, %s69
      %s84 = sphi 0, %s70
      %s90 = sphi 0, %s92
      %s93 = sphi 0, %s90
      %s94 = sphi 0, %s93
      %s110 = sphi 0, %s94
    $region4: #{tpu_custom_call.1} parent=1 // loop_header_branch
      %15 = sbr.rel (%p13) target = $region8
    $region5: #{tpu_custom_call.1} parent=1 // loop_body
      %s17 = ssub.s32 %s12, 1
      %s18 = ssub.s32 %s12, 2
      %s19 = sadd.s32 %s12, 1
      %s20 = ssub.s32 %s12, %s19
      %p21 = scmp.eq.s32.totalorder %s20, 0
      %s23 = sadd.s32 %s22, 1
      %s24 = scalar_select %p21, %s22, %s23
      %p27 = pneg %p21
      %p28 = scmp.eq.s32.totalorder %s12, 1
      %p29 = por %p27, %p28
      %p30 = scmp.ne.s32.totalorder %s22, %s25
      %p31 = scmp.eq.s32.totalorder %s12, 0
      %p32 = por %p30, %p31
      %p33 = scmp.ne.s32.totalorder %s22, %s25
      %p34 = scmp.eq.s32.totalorder %s17, 1
      %p35 = por %p33, %p34
      %p36 = scmp.ne.s32.totalorder %s25, %s26
      %p37 = scmp.eq.s32.totalorder %s17, 0
      %p38 = por %p36, %p37
      %p39 = scmp.ne.s32.totalorder %s25, %s26
      %p40 = scmp.eq.s32.totalorder %s18, 1
      %p41 = por %p39, %p40
      %p43 = scmp.ne.s32.totalorder %s26, %s42
      %p44 = scmp.eq.s32.totalorder %s18, 0
      %p45 = por %p43, %p44
      %s47 = sadd.s32 %s46, 1
      %p50 = scmp.eq.s32.totalorder %s12, 1
      %p51 = scmp.ne.s32.totalorder %s46, %s48
      %p52 = scmp.eq.s32.totalorder %s12, 0
      %p53 = por %p51, %p52
      %p54 = scmp.ne.s32.totalorder %s46, %s48
      %p55 = scmp.eq.s32.totalorder %s17, 1
      %p56 = por %p54, %p55
      %p57 = scmp.ne.s32.totalorder %s48, %s49
      %p58 = scmp.eq.s32.totalorder %s17, 0
      %p59 = por %p57, %p58
      %p60 = scmp.ne.s32.totalorder %s48, %s49
      %p61 = scmp.eq.s32.totalorder %s18, 1
      %p62 = por %p60, %p61
      %p64 = scmp.ne.s32.totalorder %s49, %s63
      %p65 = scmp.eq.s32.totalorder %s18, 0
      %p66 = por %p64, %p65
      %s68 = sadd.s32 %s67, 1
      %p71 = scmp.eq.s32.totalorder %s12, 1
      %p72 = scmp.ne.s32.totalorder %s67, %s69
      %p73 = scmp.eq.s32.totalorder %s12, 0
      %p74 = por %p72, %p73
      %p75 = scmp.ne.s32.totalorder %s67, %s69
      %p76 = scmp.eq.s32.totalorder %s17, 1
      %p77 = por %p75, %p76
      %p78 = scmp.ne.s32.totalorder %s69, %s70
      %p79 = scmp.eq.s32.totalorder %s17, 0
      %p80 = por %p78, %p79
      %p81 = scmp.ne.s32.totalorder %s69, %s70
      %p82 = scmp.eq.s32.totalorder %s18, 1
      %p83 = por %p81, %p82
      %p85 = scmp.ne.s32.totalorder %s70, %s84
      %p86 = scmp.eq.s32.totalorder %s18, 0
      %p87 = por %p85, %p86
      %s88 = ssub.s32 %s12, %s19
      %p89 = scmp.eq.s32.totalorder %s88, 0
      %s91 = sadd.s32 %s90, 1
      %s92 = scalar_select %p89, %s90, %s91
      %p95 = pneg %p89
      %p96 = scmp.eq.s32.totalorder %s12, 1
      %p97 = por %p95, %p96
      %p98 = scmp.ne.s32.totalorder %s90, %s93
      %p99 = scmp.eq.s32.totalorder %s12, 0
      %p100 = por %p98, %p99
      %p101 = scmp.ne.s32.totalorder %s90, %s93
      %p102 = scmp.eq.s32.totalorder %s17, 1
      %p103 = por %p101, %p102
      %p104 = scmp.ne.s32.totalorder %s93, %s94
      %p105 = scmp.eq.s32.totalorder %s17, 0
      %p106 = por %p104, %p105
      %p107 = scmp.ne.s32.totalorder %s93, %s94
      %p108 = scmp.eq.s32.totalorder %s18, 1
      %p109 = por %p107, %p108
      %p111 = scmp.ne.s32.totalorder %s94, %s110
      %p112 = scmp.eq.s32.totalorder %s18, 0
      %p113 = por %p111, %p112
      %p114 = scmp.le.s32.totalorder 1, %s12
      %p115 = scmp.lt.s32.totalorder %s12, 3
      %p116 = pnand %p114, %p115
      %p117 = pneg %p116
      // Predicated region
      $region9: #{tpu_custom_call.1} parent=5 // pred_check
        _
      $region10: #{tpu_custom_call.1} parent=5 // pred_check_branch
        %119 = sbr.rel (%p116) target = $region12
      $region11: #{tpu_custom_call.1} parent=5 // pred_region
        %s120 = ssub.s32 %s12, 1
        // Predicated region
        $region13: #{tpu_custom_call.1} parent=11 // pred_check
          %p121 = pneg %p59
        $region14: #{tpu_custom_call.1} parent=11 // pred_check_branch
          %123 = sbr.rel (%p121) target = $region16
        $region15: #{tpu_custom_call.1} parent=11 // pred_region
          _
        $region16: #{tpu_custom_call.1} parent=11 // pred_fallthru
          _
        // Predicated region
        $region17: #{tpu_custom_call.1} parent=11 // pred_check
          %p124 = pneg %p80
        $region18: #{tpu_custom_call.1} parent=11 // pred_check_branch
          %126 = sbr.rel (%p124) target = $region20
        $region19: #{tpu_custom_call.1} parent=11 // pred_region
          _
        $region20: #{tpu_custom_call.1} parent=11 // pred_fallthru
          _
      $region12: #{tpu_custom_call.1} parent=5 // pred_fallthru
        _
      %p127 = scmp.lt.s32.totalorder %s12, 2
      // Predicated region
      $region21: #{tpu_custom_call.1} parent=5 // pred_check
        %p128 = pneg %p127
      $region22: #{tpu_custom_call.1} parent=5 // pred_check_branch
        %130 = sbr.rel (%p128) target = $region24
      $region23: #{tpu_custom_call.1} parent=5 // pred_region
        // Predicated region
        $region25: #{tpu_custom_call.1} parent=23 // pred_check
          %p131 = pneg %p32
        $region26: #{tpu_custom_call.1} parent=23 // pred_check_branch
          %133 = sbr.rel (%p131) target = $region28
        $region27: #{tpu_custom_call.1} parent=23 // pred_region
          %p134 = scmp.lt.s32.totalorder %s12, 1
          %s135 = scalar_select %p134, %s12, 1
          %s136 = smul.addr %s135, 60
          %s137 = smul.addr %s136, 4
          %s138 = scalar_lea.vmem %s0, %s137
        $region28: #{tpu_custom_call.1} parent=23 // pred_fallthru
          _
      $region24: #{tpu_custom_call.1} parent=5 // pred_fallthru
        _
      %p139 = scmp.le.s32.totalorder 1, %s12
      %p140 = scmp.lt.s32.totalorder %s12, 3
      %p141 = pnand %p139, %p140
      %p142 = pneg %p141
      // Predicated region
      $region29: #{tpu_custom_call.1} parent=5 // pred_check
        _
      $region30: #{tpu_custom_call.1} parent=5 // pred_check_branch
        %144 = sbr.rel (%p141) target = $region32
      $region31: #{tpu_custom_call.1} parent=5 // pred_region
        %s145 = ssub.s32 %s12, 1
        %p146 = scmp.lt.s32.totalorder %s17, 1
        %s147 = scalar_select %p146, %s17, 1
        %s148 = smul.addr %s147, 60
        %s149 = smul.addr %s148, 4
        %s150 = scalar_lea.vmem %s0, %s149
        %p151 = pneg %p38
        %p152 = pneg %p35
        %p153 = pneg %p59
        %p154 = pneg %p56
        %p155 = pneg %p80
        %p156 = pneg %p77
        %p157 = pneg %p106
        %p158 = pneg %p103
        %s159 = sand.u32 %s93, 1
        %s160 = scalar_lea.sflag [#allocation3], %s159
        %s161 = sand.u32 %s93, 1
        %s162 = smul.addr %s161, 16
        %s163 = scalar_lea.vmem [#allocation2], %s162
        %p164 = scmp.lt.s32.totalorder %s17, 1
        %s165 = scalar_select %p164, %s17, 1
        %s166 = smul.addr %s165, 60
        %s167 = smul.addr %s166, 4
        %s168 = scalar_lea.vmem %s0, %s167
        %v170 = vld [vmem:[%s168] sm:$0xf]
        %v171 = vld [vmem:[%s168 + $0x4] sm:$0xf]
        %v172 = vld [vmem:[%s168 + $0x8] sm:$0x3]
        %v173 = vld [vmem:[%s168 + $0xc] sm:$0xf]
        %v174 = vld [vmem:[%s168 + $0x10] sm:$0xf]
        %v175 = vld [vmem:[%s168 + $0x14] sm:$0x3]
        %v176 = vld [vmem:[%s168 + $0x18] sm:$0xf]
        %v177 = vld [vmem:[%s168 + $0x1c] sm:$0xf]
        %v178 = vld [vmem:[%s168 + $0x20] sm:$0x3]
        %v179 = vld [vmem:[%s168 + $0x24] sm:$0xf]
        %v180 = vld [vmem:[%s168 + $0x28] sm:$0xf]
        %v181 = vld [vmem:[%s168 + $0x2c] sm:$0x3]
        %v182 = vld [vmem:[%s168 + $0x30] sm:$0xf]
        %v183 = vld [vmem:[%s168 + $0x34] sm:$0xf]
        %v184 = vld [vmem:[%s168 + $0x38] sm:$0x3]
        %v185 = vld [vmem:[%s168 + $0x3c] sm:$0xf]
        %v186 = vld [vmem:[%s168 + $0x40] sm:$0xf]
        %v187 = vld [vmem:[%s168 + $0x44] sm:$0x3]
        %v188 = vld [vmem:[%s168 + $0x48] sm:$0xf]
        %v189 = vld [vmem:[%s168 + $0x4c] sm:$0xf]
        %v190 = vld [vmem:[%s168 + $0x50] sm:$0x3]
        %v191 = vld [vmem:[%s168 + $0x54] sm:$0xf]
        %v192 = vld [vmem:[%s168 + $0x58] sm:$0xf]
        %v193 = vld [vmem:[%s168 + $0x5c] sm:$0x3]
        %v194 = vld [vmem:[%s168 + $0x60] sm:$0xf]
        %v195 = vld [vmem:[%s168 + $0x64] sm:$0xf]
        %v196 = vld [vmem:[%s168 + $0x68] sm:$0x3]
        %v197 = vld [vmem:[%s168 + $0x6c] sm:$0xf]
        %v198 = vld [vmem:[%s168 + $0x70] sm:$0xf]
        %v199 = vld [vmem:[%s168 + $0x74] sm:$0x3]
        %v200 = vld [vmem:[%s168 + $0x78] sm:$0xf]
        %v201 = vld [vmem:[%s168 + $0x7c] sm:$0xf]
        %v202 = vld [vmem:[%s168 + $0x80] sm:$0x3]
        %v203 = vld [vmem:[%s168 + $0x84] sm:$0xf]
        %v204 = vld [vmem:[%s168 + $0x88] sm:$0xf]
        %v205 = vld [vmem:[%s168 + $0x8c] sm:$0x3]
        %v206 = vld [vmem:[%s168 + $0x90] sm:$0xf]
        %v207 = vld [vmem:[%s168 + $0x94] sm:$0xf]
        %v208 = vld [vmem:[%s168 + $0x98] sm:$0x3]
        %v209 = vld [vmem:[%s168 + $0x9c] sm:$0xf]
        %v210 = vld [vmem:[%s168 + $0xa0] sm:$0xf]
        %v211 = vld [vmem:[%s168 + $0xa4] sm:$0x3]
        %v212 = vld [vmem:[%s168 + $0xa8] sm:$0xf]
        %v213 = vld [vmem:[%s168 + $0xac] sm:$0xf]
        %v214 = vld [vmem:[%s168 + $0xb0] sm:$0x3]
        %v215 = vld [vmem:[%s168 + $0xb4] sm:$0xf]
        %v216 = vld [vmem:[%s168 + $0xb8] sm:$0xf]
        %v217 = vld [vmem:[%s168 + $0xbc] sm:$0x3]
        %v218 = vld [vmem:[%s168 + $0xc0] sm:$0xf]
        %v219 = vld [vmem:[%s168 + $0xc4] sm:$0xf]
        %v220 = vld [vmem:[%s168 + $0xc8] sm:$0x3]
        %v221 = vld [vmem:[%s168 + $0xcc] sm:$0xf]
        %v222 = vld [vmem:[%s168 + $0xd0] sm:$0xf]
        %v223 = vld [vmem:[%s168 + $0xd4] sm:$0x3]
        %v224 = vld [vmem:[%s168 + $0xd8] sm:$0xf]
        %v225 = vld [vmem:[%s168 + $0xdc] sm:$0xf]
        %v226 = vld [vmem:[%s168 + $0xe0] sm:$0x3]
        %v227 = vld [vmem:[%s168 + $0xe4] sm:$0xf]
        %v228 = vld [vmem:[%s168 + $0xe8] sm:$0xf]
        %v229 = vld [vmem:[%s168 + $0xec] sm:$0x3]
        %v230 = vunpack.c.l.bf16 %v170
        %v231 = vunpack.c.l.bf16 %v171
        %v232 = vunpack.c.l.bf16 %v172
        %v233 = vunpack.c.l.bf16 %v173
        %v234 = vunpack.c.l.bf16 %v174
        %v235 = vunpack.c.l.bf16 %v175
        %v236 = vunpack.c.l.bf16 %v176
        %v237 = vunpack.c.l.bf16 %v177
        %v238 = vunpack.c.l.bf16 %v178
        %v239 = vunpack.c.l.bf16 %v179
        %v240 = vunpack.c.l.bf16 %v180
        %v241 = vunpack.c.l.bf16 %v181
        %v242 = vunpack.c.l.bf16 %v182
        %v243 = vunpack.c.l.bf16 %v183
        %v244 = vunpack.c.l.bf16 %v184
        %v245 = vunpack.c.l.bf16 %v185
        %v246 = vunpack.c.l.bf16 %v186
        %v247 = vunpack.c.l.bf16 %v187
        %v248 = vunpack.c.l.bf16 %v188
        %v249 = vunpack.c.l.bf16 %v189
        %v250 = vunpack.c.l.bf16 %v190
        %v251 = vunpack.c.l.bf16 %v191
        %v252 = vunpack.c.l.bf16 %v192
        %v253 = vunpack.c.l.bf16 %v193
        %v254 = vunpack.c.l.bf16 %v194
        %v255 = vunpack.c.l.bf16 %v195
        %v256 = vunpack.c.l.bf16 %v196
        %v257 = vunpack.c.l.bf16 %v197
        %v258 = vunpack.c.l.bf16 %v198
        %v259 = vunpack.c.l.bf16 %v199
        %v260 = vunpack.c.l.bf16 %v200
        %v261 = vunpack.c.l.bf16 %v201
        %v262 = vunpack.c.l.bf16 %v202
        %v263 = vunpack.c.l.bf16 %v203
        %v264 = vunpack.c.l.bf16 %v204
        %v265 = vunpack.c.l.bf16 %v205
        %v266 = vunpack.c.l.bf16 %v206
        %v267 = vunpack.c.l.bf16 %v207
        %v268 = vunpack.c.l.bf16 %v208
        %v269 = vunpack.c.l.bf16 %v209
        %v270 = vunpack.c.l.bf16 %v210
        %v271 = vunpack.c.l.bf16 %v211
        %v272 = vunpack.c.l.bf16 %v212
        %v273 = vunpack.c.l.bf16 %v213
        %v274 = vunpack.c.l.bf16 %v214
        %v275 = vunpack.c.l.bf16 %v215
        %v276 = vunpack.c.l.bf16 %v216
        %v277 = vunpack.c.l.bf16 %v217
        %v278 = vunpack.c.l.bf16 %v218
        %v279 = vunpack.c.l.bf16 %v219
        %v280 = vunpack.c.l.bf16 %v220
        %v281 = vunpack.c.l.bf16 %v221
        %v282 = vunpack.c.l.bf16 %v222
        %v283 = vunpack.c.l.bf16 %v223
        %v284 = vunpack.c.l.bf16 %v224
        %v285 = vunpack.c.l.bf16 %v225
        %v286 = vunpack.c.l.bf16 %v226
        %v287 = vunpack.c.l.bf16 %v227
        %v288 = vunpack.c.l.bf16 %v228
        %v289 = vunpack.c.l.bf16 %v229
        %vm338 = vcmask 1045504
        %v339 = vrot.slane %v230, 2
        %v340 = vrot.slane %v231, 2
        %v341 = vsel %vm338, %v339, %v340
        %v342 = vrot.slane %v232, 2
        %v343 = vsel %vm338, %v340, %v342
        %v344 = vrot.slane %v233, 2
        %v345 = vrot.slane %v234, 2
        %v346 = vsel %vm338, %v344, %v345
        %v347 = vrot.slane %v235, 2
        %v348 = vsel %vm338, %v345, %v347
        %v349 = vrot.slane %v236, 2
        %v350 = vrot.slane %v237, 2
        %v351 = vsel %vm338, %v349, %v350
        %v352 = vrot.slane %v238, 2
        %v353 = vsel %vm338, %v350, %v352
        %v354 = vrot.slane %v239, 2
        %v355 = vrot.slane %v240, 2
        %v356 = vsel %vm338, %v354, %v355
        %v357 = vrot.slane %v241, 2
        %v358 = vsel %vm338, %v355, %v357
        %v359 = vrot.slane %v242, 2
        %v360 = vrot.slane %v243, 2
        %v361 = vsel %vm338, %v359, %v360
        %v362 = vrot.slane %v244, 2
        %v363 = vsel %vm338, %v360, %v362
        %v364 = vrot.slane %v245, 2
        %v365 = vrot.slane %v246, 2
        %v366 = vsel %vm338, %v364, %v365
        %v367 = vrot.slane %v247, 2
        %v368 = vsel %vm338, %v365, %v367
        %v369 = vrot.slane %v248, 2
        %v370 = vrot.slane %v249, 2
        %v371 = vsel %vm338, %v369, %v370
        %v372 = vrot.slane %v250, 2
        %v373 = vsel %vm338, %v370, %v372
        %v374 = vrot.slane %v251, 2
        %v375 = vrot.slane %v252, 2
        %v376 = vsel %vm338, %v374, %v375
        %v377 = vrot.slane %v253, 2
        %v378 = vsel %vm338, %v375, %v377
        %v379 = vrot.slane %v254, 2
        %v380 = vrot.slane %v255, 2
        %v381 = vsel %vm338, %v379, %v380
        %v382 = vrot.slane %v256, 2
        %v383 = vsel %vm338, %v380, %v382
        %v384 = vrot.slane %v257, 2
        %v385 = vrot.slane %v258, 2
        %v386 = vsel %vm338, %v384, %v385
        %v387 = vrot.slane %v259, 2
        %v388 = vsel %vm338, %v385, %v387
        %v389 = vrot.slane %v260, 2
        %v390 = vrot.slane %v261, 2
        %v391 = vsel %vm338, %v389, %v390
        %v392 = vrot.slane %v262, 2
        %v393 = vsel %vm338, %v390, %v392
        %v394 = vrot.slane %v263, 2
        %v395 = vrot.slane %v264, 2
        %v396 = vsel %vm338, %v394, %v395
        %v397 = vrot.slane %v265, 2
        %v398 = vsel %vm338, %v395, %v397
        %v399 = vrot.slane %v266, 2
        %v400 = vrot.slane %v267, 2
        %v401 = vsel %vm338, %v399, %v400
        %v402 = vrot.slane %v268, 2
        %v403 = vsel %vm338, %v400, %v402
        %v404 = vrot.slane %v269, 2
        %v405 = vrot.slane %v270, 2
        %v406 = vsel %vm338, %v404, %v405
        %v407 = vrot.slane %v271, 2
        %v408 = vsel %vm338, %v405, %v407
        %v409 = vrot.slane %v272, 2
        %v410 = vrot.slane %v273, 2
        %v411 = vsel %vm338, %v409, %v410
        %v412 = vrot.slane %v274, 2
        %v413 = vsel %vm338, %v410, %v412
        %v414 = vrot.slane %v275, 2
        %v415 = vrot.slane %v276, 2
        %v416 = vsel %vm338, %v414, %v415
        %v417 = vrot.slane %v277, 2
        %v418 = vsel %vm338, %v415, %v417
        %419 = vrot.lane.b32.xlu0 %v341, 4
        %v420 = vpop.permute.xlu0 %419
        %421 = vrot.lane.b32.xlu0 %v343, 4
        %v422 = vpop.permute.xlu0 %421
        %423 = vrot.lane.b32.xlu0 %v346, 4
        %v424 = vpop.permute.xlu0 %423
        %425 = vrot.lane.b32.xlu0 %v348, 4
        %v426 = vpop.permute.xlu0 %425
        %427 = vrot.lane.b32.xlu0 %v351, 4
        %v428 = vpop.permute.xlu0 %427
        %429 = vrot.lane.b32.xlu0 %v353, 4
        %v430 = vpop.permute.xlu0 %429
        %431 = vrot.lane.b32.xlu0 %v356, 4
        %v432 = vpop.permute.xlu0 %431
        %433 = vrot.lane.b32.xlu0 %v358, 4
        %v434 = vpop.permute.xlu0 %433
        %435 = vrot.lane.b32.xlu0 %v361, 4
        %v436 = vpop.permute.xlu0 %435
        %437 = vrot.lane.b32.xlu0 %v363, 4
        %v438 = vpop.permute.xlu0 %437
        %439 = vrot.lane.b32.xlu0 %v366, 4
        %v440 = vpop.permute.xlu0 %439
        %441 = vrot.lane.b32.xlu0 %v368, 4
        %v442 = vpop.permute.xlu0 %441
        %443 = vrot.lane.b32.xlu0 %v371, 4
        %v444 = vpop.permute.xlu0 %443
        %445 = vrot.lane.b32.xlu0 %v373, 4
        %v446 = vpop.permute.xlu0 %445
        %447 = vrot.lane.b32.xlu0 %v376, 4
        %v448 = vpop.permute.xlu0 %447
        %449 = vrot.lane.b32.xlu0 %v378, 4
        %v450 = vpop.permute.xlu0 %449
        %451 = vrot.lane.b32.xlu0 %v381, 4
        %v452 = vpop.permute.xlu0 %451
        %453 = vrot.lane.b32.xlu0 %v383, 4
        %v454 = vpop.permute.xlu0 %453
        %455 = vrot.lane.b32.xlu0 %v386, 4
        %v456 = vpop.permute.xlu0 %455
        %457 = vrot.lane.b32.xlu0 %v388, 4
        %v458 = vpop.permute.xlu0 %457
        %459 = vrot.lane.b32.xlu0 %v391, 4
        %v460 = vpop.permute.xlu0 %459
        %461 = vrot.lane.b32.xlu0 %v393, 4
        %v462 = vpop.permute.xlu0 %461
        %463 = vrot.lane.b32.xlu0 %v396, 4
        %v464 = vpop.permute.xlu0 %463
        %465 = vrot.lane.b32.xlu0 %v398, 4
        %v466 = vpop.permute.xlu0 %465
        %467 = vrot.lane.b32.xlu0 %v401, 4
        %v468 = vpop.permute.xlu0 %467
        %469 = vrot.lane.b32.xlu0 %v403, 4
        %v470 = vpop.permute.xlu0 %469
        %471 = vrot.lane.b32.xlu0 %v406, 4
        %v472 = vpop.permute.xlu0 %471
        %473 = vrot.lane.b32.xlu0 %v408, 4
        %v474 = vpop.permute.xlu0 %473
        %475 = vrot.lane.b32.xlu0 %v411, 4
        %v476 = vpop.permute.xlu0 %475
        %477 = vrot.lane.b32.xlu0 %v413, 4
        %v478 = vpop.permute.xlu0 %477
        %479 = vrot.lane.b32.xlu0 %v416, 4
        %v480 = vpop.permute.xlu0 %479
        %481 = vrot.lane.b32.xlu0 %v418, 4
        %v482 = vpop.permute.xlu0 %481
        %vm515 = vcmask 1043456
        %v516 = vrot.slane %v230, 4
        %v517 = vrot.slane %v231, 4
        %v518 = vsel %vm515, %v516, %v517
        %v519 = vrot.slane %v232, 4
        %v520 = vsel %vm515, %v517, %v519
        %v521 = vrot.slane %v233, 4
        %v522 = vrot.slane %v234, 4
        %v523 = vsel %vm515, %v521, %v522
        %v524 = vrot.slane %v235, 4
        %v525 = vsel %vm515, %v522, %v524
        %v526 = vrot.slane %v236, 4
        %v527 = vrot.slane %v237, 4
        %v528 = vsel %vm515, %v526, %v527
        %v529 = vrot.slane %v238, 4
        %v530 = vsel %vm515, %v527, %v529
        %v531 = vrot.slane %v239, 4
        %v532 = vrot.slane %v240, 4
        %v533 = vsel %vm515, %v531, %v532
        %v534 = vrot.slane %v241, 4
        %v535 = vsel %vm515, %v532, %v534
        %v536 = vrot.slane %v242, 4
        %v537 = vrot.slane %v243, 4
        %v538 = vsel %vm515, %v536, %v537
        %v539 = vrot.slane %v244, 4
        %v540 = vsel %vm515, %v537, %v539
        %v541 = vrot.slane %v245, 4
        %v542 = vrot.slane %v246, 4
        %v543 = vsel %vm515, %v541, %v542
        %v544 = vrot.slane %v247, 4
        %v545 = vsel %vm515, %v542, %v544
        %v546 = vrot.slane %v248, 4
        %v547 = vrot.slane %v249, 4
        %v548 = vsel %vm515, %v546, %v547
        %v549 = vrot.slane %v250, 4
        %v550 = vsel %vm515, %v547, %v549
        %v551 = vrot.slane %v251, 4
        %v552 = vrot.slane %v252, 4
        %v553 = vsel %vm515, %v551, %v552
        %v554 = vrot.slane %v253, 4
        %v555 = vsel %vm515, %v552, %v554
        %v556 = vrot.slane %v254, 4
        %v557 = vrot.slane %v255, 4
        %v558 = vsel %vm515, %v556, %v557
        %v559 = vrot.slane %v256, 4
        %v560 = vsel %vm515, %v557, %v559
        %v561 = vrot.slane %v257, 4
        %v562 = vrot.slane %v258, 4
        %v563 = vsel %vm515, %v561, %v562
        %v564 = vrot.slane %v259, 4
        %v565 = vsel %vm515, %v562, %v564
        %v566 = vrot.slane %v260, 4
        %v567 = vrot.slane %v261, 4
        %v568 = vsel %vm515, %v566, %v567
        %v569 = vrot.slane %v262, 4
        %v570 = vsel %vm515, %v567, %v569
        %v571 = vrot.slane %v263, 4
        %v572 = vrot.slane %v264, 4
        %v573 = vsel %vm515, %v571, %v572
        %v574 = vrot.slane %v265, 4
        %v575 = vsel %vm515, %v572, %v574
        %v576 = vrot.slane %v266, 4
        %v577 = vrot.slane %v267, 4
        %v578 = vsel %vm515, %v576, %v577
        %v579 = vrot.slane %v268, 4
        %v580 = vsel %vm515, %v577, %v579
        %v581 = vrot.slane %v269, 4
        %v582 = vrot.slane %v270, 4
        %v583 = vsel %vm515, %v581, %v582
        %v584 = vrot.slane %v271, 4
        %v585 = vsel %vm515, %v582, %v584
        %v586 = vrot.slane %v272, 4
        %v587 = vrot.slane %v273, 4
        %v588 = vsel %vm515, %v586, %v587
        %v589 = vrot.slane %v274, 4
        %v590 = vsel %vm515, %v587, %v589
        %v591 = vrot.slane %v275, 4
        %v592 = vrot.slane %v276, 4
        %v593 = vsel %vm515, %v591, %v592
        %v594 = vrot.slane %v277, 4
        %v595 = vsel %vm515, %v592, %v594
        %596 = vrot.lane.b32.xlu0 %v518, 8
        %v597 = vpop.permute.xlu0 %596
        %598 = vrot.lane.b32.xlu0 %v520, 8
        %v599 = vpop.permute.xlu0 %598
        %600 = vrot.lane.b32.xlu0 %v523, 8
        %v601 = vpop.permute.xlu0 %600
        %602 = vrot.lane.b32.xlu0 %v525, 8
        %v603 = vpop.permute.xlu0 %602
        %604 = vrot.lane.b32.xlu0 %v528, 8
        %v605 = vpop.permute.xlu0 %604
        %606 = vrot.lane.b32.xlu0 %v530, 8
        %v607 = vpop.permute.xlu0 %606
        %608 = vrot.lane.b32.xlu0 %v533, 8
        %v609 = vpop.permute.xlu0 %608
        %610 = vrot.lane.b32.xlu0 %v535, 8
        %v611 = vpop.permute.xlu0 %610
        %612 = vrot.lane.b32.xlu0 %v538, 8
        %v613 = vpop.permute.xlu0 %612
        %614 = vrot.lane.b32.xlu0 %v540, 8
        %v615 = vpop.permute.xlu0 %614
        %616 = vrot.lane.b32.xlu0 %v543, 8
        %v617 = vpop.permute.xlu0 %616
        %618 = vrot.lane.b32.xlu0 %v545, 8
        %v619 = vpop.permute.xlu0 %618
        %620 = vrot.lane.b32.xlu0 %v548, 8
        %v621 = vpop.permute.xlu0 %620
        %622 = vrot.lane.b32.xlu0 %v550, 8
        %v623 = vpop.permute.xlu0 %622
        %624 = vrot.lane.b32.xlu0 %v553, 8
        %v625 = vpop.permute.xlu0 %624
        %626 = vrot.lane.b32.xlu0 %v555, 8
        %v627 = vpop.permute.xlu0 %626
        %628 = vrot.lane.b32.xlu0 %v558, 8
        %v629 = vpop.permute.xlu0 %628
        %630 = vrot.lane.b32.xlu0 %v560, 8
        %v631 = vpop.permute.xlu0 %630
        %632 = vrot.lane.b32.xlu0 %v563, 8
        %v633 = vpop.permute.xlu0 %632
        %634 = vrot.lane.b32.xlu0 %v565, 8
        %v635 = vpop.permute.xlu0 %634
        %636 = vrot.lane.b32.xlu0 %v568, 8
        %v637 = vpop.permute.xlu0 %636
        %638 = vrot.lane.b32.xlu0 %v570, 8
        %v639 = vpop.permute.xlu0 %638
        %640 = vrot.lane.b32.xlu0 %v573, 8
        %v641 = vpop.permute.xlu0 %640
        %642 = vrot.lane.b32.xlu0 %v575, 8
        %v643 = vpop.permute.xlu0 %642
        %644 = vrot.lane.b32.xlu0 %v578, 8
        %v645 = vpop.permute.xlu0 %644
        %646 = vrot.lane.b32.xlu0 %v580, 8
        %v647 = vpop.permute.xlu0 %646
        %648 = vrot.lane.b32.xlu0 %v583, 8
        %v649 = vpop.permute.xlu0 %648
        %650 = vrot.lane.b32.xlu0 %v585, 8
        %v651 = vpop.permute.xlu0 %650
        %652 = vrot.lane.b32.xlu0 %v588, 8
        %v653 = vpop.permute.xlu0 %652
        %654 = vrot.lane.b32.xlu0 %v590, 8
        %v655 = vpop.permute.xlu0 %654
        %656 = vrot.lane.b32.xlu0 %v593, 8
        %v657 = vpop.permute.xlu0 %656
        %658 = vrot.lane.b32.xlu0 %v595, 8
        %v659 = vpop.permute.xlu0 %658
        %696 = vrot.lane.b32.xlu0 %v236, 12
        %v697 = vpop.permute.xlu0 %696
        %698 = vrot.lane.b32.xlu0 %v237, 12
        %v699 = vpop.permute.xlu0 %698
        %700 = vrot.lane.b32.xlu0 %v239, 12
        %v701 = vpop.permute.xlu0 %700
        %702 = vrot.lane.b32.xlu0 %v240, 12
        %v703 = vpop.permute.xlu0 %702
        %704 = vrot.lane.b32.xlu0 %v242, 12
        %v705 = vpop.permute.xlu0 %704
        %706 = vrot.lane.b32.xlu0 %v243, 12
        %v707 = vpop.permute.xlu0 %706
        %708 = vrot.lane.b32.xlu0 %v245, 12
        %v709 = vpop.permute.xlu0 %708
        %710 = vrot.lane.b32.xlu0 %v246, 12
        %v711 = vpop.permute.xlu0 %710
        %712 = vrot.lane.b32.xlu0 %v248, 12
        %v713 = vpop.permute.xlu0 %712
        %714 = vrot.lane.b32.xlu0 %v249, 12
        %v715 = vpop.permute.xlu0 %714
        %716 = vrot.lane.b32.xlu0 %v251, 12
        %v717 = vpop.permute.xlu0 %716
        %718 = vrot.lane.b32.xlu0 %v252, 12
        %v719 = vpop.permute.xlu0 %718
        %720 = vrot.lane.b32.xlu0 %v254, 12
        %v721 = vpop.permute.xlu0 %720
        %722 = vrot.lane.b32.xlu0 %v255, 12
        %v723 = vpop.permute.xlu0 %722
        %724 = vrot.lane.b32.xlu0 %v257, 12
        %v725 = vpop.permute.xlu0 %724
        %726 = vrot.lane.b32.xlu0 %v258, 12
        %v727 = vpop.permute.xlu0 %726
        %728 = vrot.lane.b32.xlu0 %v260, 12
        %v729 = vpop.permute.xlu0 %728
        %730 = vrot.lane.b32.xlu0 %v261, 12
        %v731 = vpop.permute.xlu0 %730
        %732 = vrot.lane.b32.xlu0 %v263, 12
        %v733 = vpop.permute.xlu0 %732
        %734 = vrot.lane.b32.xlu0 %v264, 12
        %v735 = vpop.permute.xlu0 %734
        %736 = vrot.lane.b32.xlu0 %v266, 12
        %v737 = vpop.permute.xlu0 %736
        %738 = vrot.lane.b32.xlu0 %v267, 12
        %v739 = vpop.permute.xlu0 %738
        %740 = vrot.lane.b32.xlu0 %v269, 12
        %v741 = vpop.permute.xlu0 %740
        %742 = vrot.lane.b32.xlu0 %v270, 12
        %v743 = vpop.permute.xlu0 %742
        %744 = vrot.lane.b32.xlu0 %v272, 12
        %v745 = vpop.permute.xlu0 %744
        %746 = vrot.lane.b32.xlu0 %v273, 12
        %v747 = vpop.permute.xlu0 %746
        %748 = vrot.lane.b32.xlu0 %v275, 12
        %v749 = vpop.permute.xlu0 %748
        %750 = vrot.lane.b32.xlu0 %v276, 12
        %v751 = vpop.permute.xlu0 %750
        %752 = vrot.lane.b32.xlu0 %v278, 12
        %v753 = vpop.permute.xlu0 %752
        %754 = vrot.lane.b32.xlu0 %v279, 12
        %v755 = vpop.permute.xlu0 %754
        %756 = vrot.lane.b32.xlu0 %v281, 12
        %v757 = vpop.permute.xlu0 %756
        %758 = vrot.lane.b32.xlu0 %v282, 12
        %v759 = vpop.permute.xlu0 %758
        %v794 = vrot.slane %v278, 2
        %v795 = vrot.slane %v279, 2
        %v796 = vsel %vm338, %v794, %v795
        %v797 = vrot.slane %v280, 2
        %v798 = vsel %vm338, %v795, %v797
        %v799 = vrot.slane %v281, 2
        %v800 = vrot.slane %v282, 2
        %v801 = vsel %vm338, %v799, %v800
        %v802 = vrot.slane %v283, 2
        %v803 = vsel %vm338, %v800, %v802
        %804 = vrot.lane.b32.xlu0 %v351, 16
        %v805 = vpop.permute.xlu0 %804
        %806 = vrot.lane.b32.xlu0 %v353, 16
        %v807 = vpop.permute.xlu0 %806
        %808 = vrot.lane.b32.xlu0 %v356, 16
        %v809 = vpop.permute.xlu0 %808
        %810 = vrot.lane.b32.xlu0 %v358, 16
        %v811 = vpop.permute.xlu0 %810
        %812 = vrot.lane.b32.xlu0 %v361, 16
        %v813 = vpop.permute.xlu0 %812
        %814 = vrot.lane.b32.xlu0 %v363, 16
        %v815 = vpop.permute.xlu0 %814
        %816 = vrot.lane.b32.xlu0 %v366, 16
        %v817 = vpop.permute.xlu0 %816
        %818 = vrot.lane.b32.xlu0 %v368, 16
        %v819 = vpop.permute.xlu0 %818
        %820 = vrot.lane.b32.xlu0 %v371, 16
        %v821 = vpop.permute.xlu0 %820
        %822 = vrot.lane.b32.xlu0 %v373, 16
        %v823 = vpop.permute.xlu0 %822
        %824 = vrot.lane.b32.xlu0 %v376, 16
        %v825 = vpop.permute.xlu0 %824
        %826 = vrot.lane.b32.xlu0 %v378, 16
        %v827 = vpop.permute.xlu0 %826
        %828 = vrot.lane.b32.xlu0 %v381, 16
        %v829 = vpop.permute.xlu0 %828
        %830 = vrot.lane.b32.xlu0 %v383, 16
        %v831 = vpop.permute.xlu0 %830
        %832 = vrot.lane.b32.xlu0 %v386, 16
        %v833 = vpop.permute.xlu0 %832
        %834 = vrot.lane.b32.xlu0 %v388, 16
        %v835 = vpop.permute.xlu0 %834
        %836 = vrot.lane.b32.xlu0 %v391, 16
        %v837 = vpop.permute.xlu0 %836
        %838 = vrot.lane.b32.xlu0 %v393, 16
        %v839 = vpop.permute.xlu0 %838
        %840 = vrot.lane.b32.xlu0 %v396, 16
        %v841 = vpop.permute.xlu0 %840
        %842 = vrot.lane.b32.xlu0 %v398, 16
        %v843 = vpop.permute.xlu0 %842
        %844 = vrot.lane.b32.xlu0 %v401, 16
        %v845 = vpop.permute.xlu0 %844
        %846 = vrot.lane.b32.xlu0 %v403, 16
        %v847 = vpop.permute.xlu0 %846
        %848 = vrot.lane.b32.xlu0 %v406, 16
        %v849 = vpop.permute.xlu0 %848
        %850 = vrot.lane.b32.xlu0 %v408, 16
        %v851 = vpop.permute.xlu0 %850
        %852 = vrot.lane.b32.xlu0 %v411, 16
        %v853 = vpop.permute.xlu0 %852
        %854 = vrot.lane.b32.xlu0 %v413, 16
        %v855 = vpop.permute.xlu0 %854
        %856 = vrot.lane.b32.xlu0 %v416, 16
        %v857 = vpop.permute.xlu0 %856
        %858 = vrot.lane.b32.xlu0 %v418, 16
        %v859 = vpop.permute.xlu0 %858
        %860 = vrot.lane.b32.xlu0 %v796, 16
        %v861 = vpop.permute.xlu0 %860
        %862 = vrot.lane.b32.xlu0 %v798, 16
        %v863 = vpop.permute.xlu0 %862
        %864 = vrot.lane.b32.xlu0 %v801, 16
        %v865 = vpop.permute.xlu0 %864
        %866 = vrot.lane.b32.xlu0 %v803, 16
        %v867 = vpop.permute.xlu0 %866
        %v900 = vrot.slane %v278, 4
        %v901 = vrot.slane %v279, 4
        %v902 = vsel %vm515, %v900, %v901
        %v903 = vrot.slane %v280, 4
        %v904 = vsel %vm515, %v901, %v903
        %v905 = vrot.slane %v281, 4
        %v906 = vrot.slane %v282, 4
        %v907 = vsel %vm515, %v905, %v906
        %v908 = vrot.slane %v283, 4
        %v909 = vsel %vm515, %v906, %v908
        %910 = vrot.lane.b32.xlu0 %v528, 20
        %v911 = vpop.permute.xlu0 %910
        %912 = vrot.lane.b32.xlu0 %v530, 20
        %v913 = vpop.permute.xlu0 %912
        %914 = vrot.lane.b32.xlu0 %v533, 20
        %v915 = vpop.permute.xlu0 %914
        %916 = vrot.lane.b32.xlu0 %v535, 20
        %v917 = vpop.permute.xlu0 %916
        %918 = vrot.lane.b32.xlu0 %v538, 20
        %v919 = vpop.permute.xlu0 %918
        %920 = vrot.lane.b32.xlu0 %v540, 20
        %v921 = vpop.permute.xlu0 %920
        %922 = vrot.lane.b32.xlu0 %v543, 20
        %v923 = vpop.permute.xlu0 %922
        %924 = vrot.lane.b32.xlu0 %v545, 20
        %v925 = vpop.permute.xlu0 %924
        %926 = vrot.lane.b32.xlu0 %v548, 20
        %v927 = vpop.permute.xlu0 %926
        %928 = vrot.lane.b32.xlu0 %v550, 20
        %v929 = vpop.permute.xlu0 %928
        %930 = vrot.lane.b32.xlu0 %v553, 20
        %v931 = vpop.permute.xlu0 %930
        %932 = vrot.lane.b32.xlu0 %v555, 20
        %v933 = vpop.permute.xlu0 %932
        %934 = vrot.lane.b32.xlu0 %v558, 20
        %v935 = vpop.permute.xlu0 %934
        %936 = vrot.lane.b32.xlu0 %v560, 20
        %v937 = vpop.permute.xlu0 %936
        %938 = vrot.lane.b32.xlu0 %v563, 20
        %v939 = vpop.permute.xlu0 %938
        %940 = vrot.lane.b32.xlu0 %v565, 20
        %v941 = vpop.permute.xlu0 %940
        %942 = vrot.lane.b32.xlu0 %v568, 20
        %v943 = vpop.permute.xlu0 %942
        %944 = vrot.lane.b32.xlu0 %v570, 20
        %v945 = vpop.permute.xlu0 %944
        %946 = vrot.lane.b32.xlu0 %v573, 20
        %v947 = vpop.permute.xlu0 %946
        %948 = vrot.lane.b32.xlu0 %v575, 20
        %v949 = vpop.permute.xlu0 %948
        %950 = vrot.lane.b32.xlu0 %v578, 20
        %v951 = vpop.permute.xlu0 %950
        %952 = vrot.lane.b32.xlu0 %v580, 20
        %v953 = vpop.permute.xlu0 %952
        %954 = vrot.lane.b32.xlu0 %v583, 20
        %v955 = vpop.permute.xlu0 %954
        %956 = vrot.lane.b32.xlu0 %v585, 20
        %v957 = vpop.permute.xlu0 %956
        %958 = vrot.lane.b32.xlu0 %v588, 20
        %v959 = vpop.permute.xlu0 %958
        %960 = vrot.lane.b32.xlu0 %v590, 20
        %v961 = vpop.permute.xlu0 %960
        %962 = vrot.lane.b32.xlu0 %v593, 20
        %v963 = vpop.permute.xlu0 %962
        %964 = vrot.lane.b32.xlu0 %v595, 20
        %v965 = vpop.permute.xlu0 %964
        %966 = vrot.lane.b32.xlu0 %v902, 20
        %v967 = vpop.permute.xlu0 %966
        %968 = vrot.lane.b32.xlu0 %v904, 20
        %v969 = vpop.permute.xlu0 %968
        %970 = vrot.lane.b32.xlu0 %v907, 20
        %v971 = vpop.permute.xlu0 %970
        %972 = vrot.lane.b32.xlu0 %v909, 20
        %v973 = vpop.permute.xlu0 %972
        %1010 = vrot.lane.b32.xlu0 %v242, 24
        %v1011 = vpop.permute.xlu0 %1010
        %1012 = vrot.lane.b32.xlu0 %v243, 24
        %v1013 = vpop.permute.xlu0 %1012
        %1014 = vrot.lane.b32.xlu0 %v245, 24
        %v1015 = vpop.permute.xlu0 %1014
        %1016 = vrot.lane.b32.xlu0 %v246, 24
        %v1017 = vpop.permute.xlu0 %1016
        %1018 = vrot.lane.b32.xlu0 %v248, 24
        %v1019 = vpop.permute.xlu0 %1018
        %1020 = vrot.lane.b32.xlu0 %v249, 24
        %v1021 = vpop.permute.xlu0 %1020
        %1022 = vrot.lane.b32.xlu0 %v251, 24
        %v1023 = vpop.permute.xlu0 %1022
        %1024 = vrot.lane.b32.xlu0 %v252, 24
        %v1025 = vpop.permute.xlu0 %1024
        %1026 = vrot.lane.b32.xlu0 %v254, 24
        %v1027 = vpop.permute.xlu0 %1026
        %1028 = vrot.lane.b32.xlu0 %v255, 24
        %v1029 = vpop.permute.xlu0 %1028
        %1030 = vrot.lane.b32.xlu0 %v257, 24
        %v1031 = vpop.permute.xlu0 %1030
        %1032 = vrot.lane.b32.xlu0 %v258, 24
        %v1033 = vpop.permute.xlu0 %1032
        %1034 = vrot.lane.b32.xlu0 %v260, 24
        %v1035 = vpop.permute.xlu0 %1034
        %1036 = vrot.lane.b32.xlu0 %v261, 24
        %v1037 = vpop.permute.xlu0 %1036
        %1038 = vrot.lane.b32.xlu0 %v263, 24
        %v1039 = vpop.permute.xlu0 %1038
        %1040 = vrot.lane.b32.xlu0 %v264, 24
        %v1041 = vpop.permute.xlu0 %1040
        %1042 = vrot.lane.b32.xlu0 %v266, 24
        %v1043 = vpop.permute.xlu0 %1042
        %1044 = vrot.lane.b32.xlu0 %v267, 24
        %v1045 = vpop.permute.xlu0 %1044
        %1046 = vrot.lane.b32.xlu0 %v269, 24
        %v1047 = vpop.permute.xlu0 %1046
        %1048 = vrot.lane.b32.xlu0 %v270, 24
        %v1049 = vpop.permute.xlu0 %1048
        %1050 = vrot.lane.b32.xlu0 %v272, 24
        %v1051 = vpop.permute.xlu0 %1050
        %1052 = vrot.lane.b32.xlu0 %v273, 24
        %v1053 = vpop.permute.xlu0 %1052
        %1054 = vrot.lane.b32.xlu0 %v275, 24
        %v1055 = vpop.permute.xlu0 %1054
        %1056 = vrot.lane.b32.xlu0 %v276, 24
        %v1057 = vpop.permute.xlu0 %1056
        %1058 = vrot.lane.b32.xlu0 %v278, 24
        %v1059 = vpop.permute.xlu0 %1058
        %1060 = vrot.lane.b32.xlu0 %v279, 24
        %v1061 = vpop.permute.xlu0 %1060
        %1062 = vrot.lane.b32.xlu0 %v281, 24
        %v1063 = vpop.permute.xlu0 %1062
        %1064 = vrot.lane.b32.xlu0 %v282, 24
        %v1065 = vpop.permute.xlu0 %1064
        %1066 = vrot.lane.b32.xlu0 %v284, 24
        %v1067 = vpop.permute.xlu0 %1066
        %1068 = vrot.lane.b32.xlu0 %v285, 24
        %v1069 = vpop.permute.xlu0 %1068
        %1070 = vrot.lane.b32.xlu0 %v287, 24
        %v1071 = vpop.permute.xlu0 %1070
        %1072 = vrot.lane.b32.xlu0 %v288, 24
        %v1073 = vpop.permute.xlu0 %1072
        %v1108 = vrot.slane %v284, 2
        %v1109 = vrot.slane %v285, 2
        %v1110 = vsel %vm338, %v1108, %v1109
        %v1111 = vrot.slane %v286, 2
        %v1112 = vsel %vm338, %v1109, %v1111
        %v1113 = vrot.slane %v287, 2
        %v1114 = vrot.slane %v288, 2
        %v1115 = vsel %vm338, %v1113, %v1114
        %v1116 = vrot.slane %v289, 2
        %v1117 = vsel %vm338, %v1114, %v1116
        %1118 = vrot.lane.b32.xlu0 %v361, 28
        %v1119 = vpop.permute.xlu0 %1118
        %1120 = vrot.lane.b32.xlu0 %v363, 28
        %v1121 = vpop.permute.xlu0 %1120
        %1122 = vrot.lane.b32.xlu0 %v366, 28
        %v1123 = vpop.permute.xlu0 %1122
        %1124 = vrot.lane.b32.xlu0 %v368, 28
        %v1125 = vpop.permute.xlu0 %1124
        %1126 = vrot.lane.b32.xlu0 %v371, 28
        %v1127 = vpop.permute.xlu0 %1126
        %1128 = vrot.lane.b32.xlu0 %v373, 28
        %v1129 = vpop.permute.xlu0 %1128
        %1130 = vrot.lane.b32.xlu0 %v376, 28
        %v1131 = vpop.permute.xlu0 %1130
        %1132 = vrot.lane.b32.xlu0 %v378, 28
        %v1133 = vpop.permute.xlu0 %1132
        %1134 = vrot.lane.b32.xlu0 %v381, 28
        %v1135 = vpop.permute.xlu0 %1134
        %1136 = vrot.lane.b32.xlu0 %v383, 28
        %v1137 = vpop.permute.xlu0 %1136
        %1138 = vrot.lane.b32.xlu0 %v386, 28
        %v1139 = vpop.permute.xlu0 %1138
        %1140 = vrot.lane.b32.xlu0 %v388, 28
        %v1141 = vpop.permute.xlu0 %1140
        %1142 = vrot.lane.b32.xlu0 %v391, 28
        %v1143 = vpop.permute.xlu0 %1142
        %1144 = vrot.lane.b32.xlu0 %v393, 28
        %v1145 = vpop.permute.xlu0 %1144
        %1146 = vrot.lane.b32.xlu0 %v396, 28
        %v1147 = vpop.permute.xlu0 %1146
        %1148 = vrot.lane.b32.xlu0 %v398, 28
        %v1149 = vpop.permute.xlu0 %1148
        %1150 = vrot.lane.b32.xlu0 %v401, 28
        %v1151 = vpop.permute.xlu0 %1150
        %1152 = vrot.lane.b32.xlu0 %v403, 28
        %v1153 = vpop.permute.xlu0 %1152
        %1154 = vrot.lane.b32.xlu0 %v406, 28
        %v1155 = vpop.permute.xlu0 %1154
        %1156 = vrot.lane.b32.xlu0 %v408, 28
        %v1157 = vpop.permute.xlu0 %1156
        %1158 = vrot.lane.b32.xlu0 %v411, 28
        %v1159 = vpop.permute.xlu0 %1158
        %1160 = vrot.lane.b32.xlu0 %v413, 28
        %v1161 = vpop.permute.xlu0 %1160
        %1162 = vrot.lane.b32.xlu0 %v416, 28
        %v1163 = vpop.permute.xlu0 %1162
        %1164 = vrot.lane.b32.xlu0 %v418, 28
        %v1165 = vpop.permute.xlu0 %1164
        %1166 = vrot.lane.b32.xlu0 %v796, 28
        %v1167 = vpop.permute.xlu0 %1166
        %1168 = vrot.lane.b32.xlu0 %v798, 28
        %v1169 = vpop.permute.xlu0 %1168
        %1170 = vrot.lane.b32.xlu0 %v801, 28
        %v1171 = vpop.permute.xlu0 %1170
        %1172 = vrot.lane.b32.xlu0 %v803, 28
        %v1173 = vpop.permute.xlu0 %1172
        %1174 = vrot.lane.b32.xlu0 %v1110, 28
        %v1175 = vpop.permute.xlu0 %1174
        %1176 = vrot.lane.b32.xlu0 %v1112, 28
        %v1177 = vpop.permute.xlu0 %1176
        %1178 = vrot.lane.b32.xlu0 %v1115, 28
        %v1179 = vpop.permute.xlu0 %1178
        %1180 = vrot.lane.b32.xlu0 %v1117, 28
        %v1181 = vpop.permute.xlu0 %1180
        %v1214 = vrot.slane %v284, 4
        %v1215 = vrot.slane %v285, 4
        %v1216 = vsel %vm515, %v1214, %v1215
        %v1217 = vrot.slane %v286, 4
        %v1218 = vsel %vm515, %v1215, %v1217
        %v1219 = vrot.slane %v287, 4
        %v1220 = vrot.slane %v288, 4
        %v1221 = vsel %vm515, %v1219, %v1220
        %v1222 = vrot.slane %v289, 4
        %v1223 = vsel %vm515, %v1220, %v1222
        %1224 = vrot.lane.b32.xlu0 %v538, 32
        %v1225 = vpop.permute.xlu0 %1224
        %1226 = vrot.lane.b32.xlu0 %v540, 32
        %v1227 = vpop.permute.xlu0 %1226
        %1228 = vrot.lane.b32.xlu0 %v543, 32
        %v1229 = vpop.permute.xlu0 %1228
        %1230 = vrot.lane.b32.xlu0 %v545, 32
        %v1231 = vpop.permute.xlu0 %1230
        %1232 = vrot.lane.b32.xlu0 %v548, 32
        %v1233 = vpop.permute.xlu0 %1232
        %1234 = vrot.lane.b32.xlu0 %v550, 32
        %v1235 = vpop.permute.xlu0 %1234
        %1236 = vrot.lane.b32.xlu0 %v553, 32
        %v1237 = vpop.permute.xlu0 %1236
        %1238 = vrot.lane.b32.xlu0 %v555, 32
        %v1239 = vpop.permute.xlu0 %1238
        %1240 = vrot.lane.b32.xlu0 %v558, 32
        %v1241 = vpop.permute.xlu0 %1240
        %1242 = vrot.lane.b32.xlu0 %v560, 32
        %v1243 = vpop.permute.xlu0 %1242
        %1244 = vrot.lane.b32.xlu0 %v563, 32
        %v1245 = vpop.permute.xlu0 %1244
        %1246 = vrot.lane.b32.xlu0 %v565, 32
        %v1247 = vpop.permute.xlu0 %1246
        %1248 = vrot.lane.b32.xlu0 %v568, 32
        %v1249 = vpop.permute.xlu0 %1248
        %1250 = vrot.lane.b32.xlu0 %v570, 32
        %v1251 = vpop.permute.xlu0 %1250
        %1252 = vrot.lane.b32.xlu0 %v573, 32
        %v1253 = vpop.permute.xlu0 %1252
        %1254 = vrot.lane.b32.xlu0 %v575, 32
        %v1255 = vpop.permute.xlu0 %1254
        %1256 = vrot.lane.b32.xlu0 %v578, 32
        %v1257 = vpop.permute.xlu0 %1256
        %1258 = vrot.lane.b32.xlu0 %v580, 32
        %v1259 = vpop.permute.xlu0 %1258
        %1260 = vrot.lane.b32.xlu0 %v583, 32
        %v1261 = vpop.permute.xlu0 %1260
        %1262 = vrot.lane.b32.xlu0 %v585, 32
        %v1263 = vpop.permute.xlu0 %1262
        %1264 = vrot.lane.b32.xlu0 %v588, 32
        %v1265 = vpop.permute.xlu0 %1264
        %1266 = vrot.lane.b32.xlu0 %v590, 32
        %v1267 = vpop.permute.xlu0 %1266
        %1268 = vrot.lane.b32.xlu0 %v593, 32
        %v1269 = vpop.permute.xlu0 %1268
        %1270 = vrot.lane.b32.xlu0 %v595, 32
        %v1271 = vpop.permute.xlu0 %1270
        %1272 = vrot.lane.b32.xlu0 %v902, 32
        %v1273 = vpop.permute.xlu0 %1272
        %1274 = vrot.lane.b32.xlu0 %v904, 32
        %v1275 = vpop.permute.xlu0 %1274
        %1276 = vrot.lane.b32.xlu0 %v907, 32
        %v1277 = vpop.permute.xlu0 %1276
        %1278 = vrot.lane.b32.xlu0 %v909, 32
        %v1279 = vpop.permute.xlu0 %1278
        %1280 = vrot.lane.b32.xlu0 %v1216, 32
        %v1281 = vpop.permute.xlu0 %1280
        %1282 = vrot.lane.b32.xlu0 %v1218, 32
        %v1283 = vpop.permute.xlu0 %1282
        %1284 = vrot.lane.b32.xlu0 %v1221, 32
        %v1285 = vpop.permute.xlu0 %1284
        %1286 = vrot.lane.b32.xlu0 %v1223, 32
        %v1287 = vpop.permute.xlu0 %1286
        %vm1320 = vcmask 31744
        %v1321 = vsel %vm1320, %v230, %v420
        %v1322 = vsel %vm1320, %v231, %v422
        %v1323 = vsel %vm1320, %v233, %v424
        %v1324 = vsel %vm1320, %v234, %v426
        %v1325 = vsel %vm1320, %v236, %v428
        %v1326 = vsel %vm1320, %v237, %v430
        %v1327 = vsel %vm1320, %v239, %v432
        %v1328 = vsel %vm1320, %v240, %v434
        %v1329 = vsel %vm1320, %v242, %v436
        %v1330 = vsel %vm1320, %v243, %v438
        %v1331 = vsel %vm1320, %v245, %v440
        %v1332 = vsel %vm1320, %v246, %v442
        %v1333 = vsel %vm1320, %v248, %v444
        %v1334 = vsel %vm1320, %v249, %v446
        %v1335 = vsel %vm1320, %v251, %v448
        %v1336 = vsel %vm1320, %v252, %v450
        %v1337 = vsel %vm1320, %v254, %v452
        %v1338 = vsel %vm1320, %v255, %v454
        %v1339 = vsel %vm1320, %v257, %v456
        %v1340 = vsel %vm1320, %v258, %v458
        %v1341 = vsel %vm1320, %v260, %v460
        %v1342 = vsel %vm1320, %v261, %v462
        %v1343 = vsel %vm1320, %v263, %v464
        %v1344 = vsel %vm1320, %v264, %v466
        %v1345 = vsel %vm1320, %v266, %v468
        %v1346 = vsel %vm1320, %v267, %v470
        %v1347 = vsel %vm1320, %v269, %v472
        %v1348 = vsel %vm1320, %v270, %v474
        %v1349 = vsel %vm1320, %v272, %v476
        %v1350 = vsel %vm1320, %v273, %v478
        %v1351 = vsel %vm1320, %v275, %v480
        %v1352 = vsel %vm1320, %v276, %v482
        %vm1353 = vcmask 64512
        %v1354 = vsel %vm1353, %v1321, %v597
        %v1355 = vsel %vm1353, %v1322, %v599
        %v1356 = vsel %vm1353, %v1323, %v601
        %v1357 = vsel %vm1353, %v1324, %v603
        %v1358 = vsel %vm1353, %v1325, %v605
        %v1359 = vsel %vm1353, %v1326, %v607
        %v1360 = vsel %vm1353, %v1327, %v609
        %v1361 = vsel %vm1353, %v1328, %v611
        %v1362 = vsel %vm1353, %v1329, %v613
        %v1363 = vsel %vm1353, %v1330, %v615
        %v1364 = vsel %vm1353, %v1331, %v617
        %v1365 = vsel %vm1353, %v1332, %v619
        %v1366 = vsel %vm1353, %v1333, %v621
        %v1367 = vsel %vm1353, %v1334, %v623
        %v1368 = vsel %vm1353, %v1335, %v625
        %v1369 = vsel %vm1353, %v1336, %v627
        %v1370 = vsel %vm1353, %v1337, %v629
        %v1371 = vsel %vm1353, %v1338, %v631
        %v1372 = vsel %vm1353, %v1339, %v633
        %v1373 = vsel %vm1353, %v1340, %v635
        %v1374 = vsel %vm1353, %v1341, %v637
        %v1375 = vsel %vm1353, %v1342, %v639
        %v1376 = vsel %vm1353, %v1343, %v641
        %v1377 = vsel %vm1353, %v1344, %v643
        %v1378 = vsel %vm1353, %v1345, %v645
        %v1379 = vsel %vm1353, %v1346, %v647
        %v1380 = vsel %vm1353, %v1347, %v649
        %v1381 = vsel %vm1353, %v1348, %v651
        %v1382 = vsel %vm1353, %v1349, %v653
        %v1383 = vsel %vm1353, %v1350, %v655
        %v1384 = vsel %vm1353, %v1351, %v657
        %v1385 = vsel %vm1353, %v1352, %v659
        %vm1386 = vcmask 97280
        %v1387 = vsel %vm1386, %v1354, %v697
        %v1388 = vsel %vm1386, %v1355, %v699
        %v1389 = vsel %vm1386, %v1356, %v701
        %v1390 = vsel %vm1386, %v1357, %v703
        %v1391 = vsel %vm1386, %v1358, %v705
        %v1392 = vsel %vm1386, %v1359, %v707
        %v1393 = vsel %vm1386, %v1360, %v709
        %v1394 = vsel %vm1386, %v1361, %v711
        %v1395 = vsel %vm1386, %v1362, %v713
        %v1396 = vsel %vm1386, %v1363, %v715
        %v1397 = vsel %vm1386, %v1364, %v717
        %v1398 = vsel %vm1386, %v1365, %v719
        %v1399 = vsel %vm1386, %v1366, %v721
        %v1400 = vsel %vm1386, %v1367, %v723
        %v1401 = vsel %vm1386, %v1368, %v725
        %v1402 = vsel %vm1386, %v1369, %v727
        %v1403 = vsel %vm1386, %v1370, %v729
        %v1404 = vsel %vm1386, %v1371, %v731
        %v1405 = vsel %vm1386, %v1372, %v733
        %v1406 = vsel %vm1386, %v1373, %v735
        %v1407 = vsel %vm1386, %v1374, %v737
        %v1408 = vsel %vm1386, %v1375, %v739
        %v1409 = vsel %vm1386, %v1376, %v741
        %v1410 = vsel %vm1386, %v1377, %v743
        %v1411 = vsel %vm1386, %v1378, %v745
        %v1412 = vsel %vm1386, %v1379, %v747
        %v1413 = vsel %vm1386, %v1380, %v749
        %v1414 = vsel %vm1386, %v1381, %v751
        %v1415 = vsel %vm1386, %v1382, %v753
        %v1416 = vsel %vm1386, %v1383, %v755
        %v1417 = vsel %vm1386, %v1384, %v757
        %v1418 = vsel %vm1386, %v1385, %v759
        %vm1419 = vcmask 130048
        %v1420 = vsel %vm1419, %v1387, %v805
        %v1421 = vsel %vm1419, %v1388, %v807
        %v1422 = vsel %vm1419, %v1389, %v809
        %v1423 = vsel %vm1419, %v1390, %v811
        %v1424 = vsel %vm1419, %v1391, %v813
        %v1425 = vsel %vm1419, %v1392, %v815
        %v1426 = vsel %vm1419, %v1393, %v817
        %v1427 = vsel %vm1419, %v1394, %v819
        %v1428 = vsel %vm1419, %v1395, %v821
        %v1429 = vsel %vm1419, %v1396, %v823
        %v1430 = vsel %vm1419, %v1397, %v825
        %v1431 = vsel %vm1419, %v1398, %v827
        %v1432 = vsel %vm1419, %v1399, %v829
        %v1433 = vsel %vm1419, %v1400, %v831
        %v1434 = vsel %vm1419, %v1401, %v833
        %v1435 = vsel %vm1419, %v1402, %v835
        %v1436 = vsel %vm1419, %v1403, %v837
        %v1437 = vsel %vm1419, %v1404, %v839
        %v1438 = vsel %vm1419, %v1405, %v841
        %v1439 = vsel %vm1419, %v1406, %v843
        %v1440 = vsel %vm1419, %v1407, %v845
        %v1441 = vsel %vm1419, %v1408, %v847
        %v1442 = vsel %vm1419, %v1409, %v849
        %v1443 = vsel %vm1419, %v1410, %v851
        %v1444 = vsel %vm1419, %v1411, %v853
        %v1445 = vsel %vm1419, %v1412, %v855
        %v1446 = vsel %vm1419, %v1413, %v857
        %v1447 = vsel %vm1419, %v1414, %v859
        %v1448 = vsel %vm1419, %v1415, %v861
        %v1449 = vsel %vm1419, %v1416, %v863
        %v1450 = vsel %vm1419, %v1417, %v865
        %v1451 = vsel %vm1419, %v1418, %v867
        %vm1452 = vcmask 162816
        %v1453 = vsel %vm1452, %v1420, %v911
        %v1454 = vsel %vm1452, %v1421, %v913
        %v1455 = vsel %vm1452, %v1422, %v915
        %v1456 = vsel %vm1452, %v1423, %v917
        %v1457 = vsel %vm1452, %v1424, %v919
        %v1458 = vsel %vm1452, %v1425, %v921
        %v1459 = vsel %vm1452, %v1426, %v923
        %v1460 = vsel %vm1452, %v1427, %v925
        %v1461 = vsel %vm1452, %v1428, %v927
        %v1462 = vsel %vm1452, %v1429, %v929
        %v1463 = vsel %vm1452, %v1430, %v931
        %v1464 = vsel %vm1452, %v1431, %v933
        %v1465 = vsel %vm1452, %v1432, %v935
        %v1466 = vsel %vm1452, %v1433, %v937
        %v1467 = vsel %vm1452, %v1434, %v939
        %v1468 = vsel %vm1452, %v1435, %v941
        %v1469 = vsel %vm1452, %v1436, %v943
        %v1470 = vsel %vm1452, %v1437, %v945
        %v1471 = vsel %vm1452, %v1438, %v947
        %v1472 = vsel %vm1452, %v1439, %v949
        %v1473 = vsel %vm1452, %v1440, %v951
        %v1474 = vsel %vm1452, %v1441, %v953
        %v1475 = vsel %vm1452, %v1442, %v955
        %v1476 = vsel %vm1452, %v1443, %v957
        %v1477 = vsel %vm1452, %v1444, %v959
        %v1478 = vsel %vm1452, %v1445, %v961
        %v1479 = vsel %vm1452, %v1446, %v963
        %v1480 = vsel %vm1452, %v1447, %v965
        %v1481 = vsel %vm1452, %v1448, %v967
        %v1482 = vsel %vm1452, %v1449, %v969
        %v1483 = vsel %vm1452, %v1450, %v971
        %v1484 = vsel %vm1452, %v1451, %v973
        %vm1485 = vcmask 195584
        %v1486 = vsel %vm1485, %v1453, %v1011
        %v1487 = vsel %vm1485, %v1454, %v1013
        %v1488 = vsel %vm1485, %v1455, %v1015
        %v1489 = vsel %vm1485, %v1456, %v1017
        %v1490 = vsel %vm1485, %v1457, %v1019
        %v1491 = vsel %vm1485, %v1458, %v1021
        %v1492 = vsel %vm1485, %v1459, %v1023
        %v1493 = vsel %vm1485, %v1460, %v1025
        %v1494 = vsel %vm1485, %v1461, %v1027
        %v1495 = vsel %vm1485, %v1462, %v1029
        %v1496 = vsel %vm1485, %v1463, %v1031
        %v1497 = vsel %vm1485, %v1464, %v1033
        %v1498 = vsel %vm1485, %v1465, %v1035
        %v1499 = vsel %vm1485, %v1466, %v1037
        %v1500 = vsel %vm1485, %v1467, %v1039
        %v1501 = vsel %vm1485, %v1468, %v1041
        %v1502 = vsel %vm1485, %v1469, %v1043
        %v1503 = vsel %vm1485, %v1470, %v1045
        %v1504 = vsel %vm1485, %v1471, %v1047
        %v1505 = vsel %vm1485, %v1472, %v1049
        %v1506 = vsel %vm1485, %v1473, %v1051
        %v1507 = vsel %vm1485, %v1474, %v1053
        %v1508 = vsel %vm1485, %v1475, %v1055
        %v1509 = vsel %vm1485, %v1476, %v1057
        %v1510 = vsel %vm1485, %v1477, %v1059
        %v1511 = vsel %vm1485, %v1478, %v1061
        %v1512 = vsel %vm1485, %v1479, %v1063
        %v1513 = vsel %vm1485, %v1480, %v1065
        %v1514 = vsel %vm1485, %v1481, %v1067
        %v1515 = vsel %vm1485, %v1482, %v1069
        %v1516 = vsel %vm1485, %v1483, %v1071
        %v1517 = vsel %vm1485, %v1484, %v1073
        %vm1518 = vcmask 228352
        %v1519 = vsel %vm1518, %v1486, %v1119
        %v1520 = vsel %vm1518, %v1487, %v1121
        %v1521 = vsel %vm1518, %v1488, %v1123
        %v1522 = vsel %vm1518, %v1489, %v1125
        %v1523 = vsel %vm1518, %v1490, %v1127
        %v1524 = vsel %vm1518, %v1491, %v1129
        %v1525 = vsel %vm1518, %v1492, %v1131
        %v1526 = vsel %vm1518, %v1493, %v1133
        %v1527 = vsel %vm1518, %v1494, %v1135
        %v1528 = vsel %vm1518, %v1495, %v1137
        %v1529 = vsel %vm1518, %v1496, %v1139
        %v1530 = vsel %vm1518, %v1497, %v1141
        %v1531 = vsel %vm1518, %v1498, %v1143
        %v1532 = vsel %vm1518, %v1499, %v1145
        %v1533 = vsel %vm1518, %v1500, %v1147
        %v1534 = vsel %vm1518, %v1501, %v1149
        %v1535 = vsel %vm1518, %v1502, %v1151
        %v1536 = vsel %vm1518, %v1503, %v1153
        %v1537 = vsel %vm1518, %v1504, %v1155
        %v1538 = vsel %vm1518, %v1505, %v1157
        %v1539 = vsel %vm1518, %v1506, %v1159
        %v1540 = vsel %vm1518, %v1507, %v1161
        %v1541 = vsel %vm1518, %v1508, %v1163
        %v1542 = vsel %vm1518, %v1509, %v1165
        %v1543 = vsel %vm1518, %v1510, %v1167
        %v1544 = vsel %vm1518, %v1511, %v1169
        %v1545 = vsel %vm1518, %v1512, %v1171
        %v1546 = vsel %vm1518, %v1513, %v1173
        %v1547 = vsel %vm1518, %v1514, %v1175
        %v1548 = vsel %vm1518, %v1515, %v1177
        %v1549 = vsel %vm1518, %v1516, %v1179
        %v1550 = vsel %vm1518, %v1517, %v1181
        %vm1551 = vcmask 261120
        %v1552 = vsel %vm1551, %v1519, %v1225
        %v1553 = vsel %vm1551, %v1520, %v1227
        %v1554 = vsel %vm1551, %v1521, %v1229
        %v1555 = vsel %vm1551, %v1522, %v1231
        %v1556 = vsel %vm1551, %v1523, %v1233
        %v1557 = vsel %vm1551, %v1524, %v1235
        %v1558 = vsel %vm1551, %v1525, %v1237
        %v1559 = vsel %vm1551, %v1526, %v1239
        %v1560 = vsel %vm1551, %v1527, %v1241
        %v1561 = vsel %vm1551, %v1528, %v1243
        %v1562 = vsel %vm1551, %v1529, %v1245
        %v1563 = vsel %vm1551, %v1530, %v1247
        %v1564 = vsel %vm1551, %v1531, %v1249
        %v1565 = vsel %vm1551, %v1532, %v1251
        %v1566 = vsel %vm1551, %v1533, %v1253
        %v1567 = vsel %vm1551, %v1534, %v1255
        %v1568 = vsel %vm1551, %v1535, %v1257
        %v1569 = vsel %vm1551, %v1536, %v1259
        %v1570 = vsel %vm1551, %v1537, %v1261
        %v1571 = vsel %vm1551, %v1538, %v1263
        %v1572 = vsel %vm1551, %v1539, %v1265
        %v1573 = vsel %vm1551, %v1540, %v1267
        %v1574 = vsel %vm1551, %v1541, %v1269
        %v1575 = vsel %vm1551, %v1542, %v1271
        %v1576 = vsel %vm1551, %v1543, %v1273
        %v1577 = vsel %vm1551, %v1544, %v1275
        %v1578 = vsel %vm1551, %v1545, %v1277
        %v1579 = vsel %vm1551, %v1546, %v1279
        %v1580 = vsel %vm1551, %v1547, %v1281
        %v1581 = vsel %vm1551, %v1548, %v1283
        %v1582 = vsel %vm1551, %v1549, %v1285
        %v1583 = vsel %vm1551, %v1550, %v1287
        %v1584 = vpack.c.bf16 %v1553, %v1552
        %v1585 = vpack.c.bf16 %v1555, %v1554
        %v1586 = vpack.c.bf16 %v1557, %v1556
        %v1587 = vpack.c.bf16 %v1559, %v1558
        %v1588 = vpack.c.bf16 %v1561, %v1560
        %v1589 = vpack.c.bf16 %v1563, %v1562
        %v1590 = vpack.c.bf16 %v1565, %v1564
        %v1591 = vpack.c.bf16 %v1567, %v1566
        %v1592 = vpack.c.bf16 %v1569, %v1568
        %v1593 = vpack.c.bf16 %v1571, %v1570
        %v1594 = vpack.c.bf16 %v1573, %v1572
        %v1595 = vpack.c.bf16 %v1575, %v1574
        %v1596 = vpack.c.bf16 %v1577, %v1576
        %v1597 = vpack.c.bf16 %v1579, %v1578
        %v1598 = vpack.c.bf16 %v1581, %v1580
        %v1599 = vpack.c.bf16 %v1583, %v1582
        %v1600 = vld [vmem:[%s1] sm:$0xf]
        %v1601 = vld [vmem:[%s1 + $0x4] sm:$0xf]
        %v1602 = vld [vmem:[%s1 + $0x8] sm:$0xf]
        %v1603 = vld [vmem:[%s1 + $0xc] sm:$0xf]
        %v1604 = vld [vmem:[%s1 + $0x10] sm:$0x3]
        %v1605 = vld [vmem:[%s2] sm:$0x1]
        %v1607 = vlaneseq
        %v1608 = vshrl.u32 %v1607, 7
        %v1609 = vsub.s32 0, %v1608
        %v1610 = vrot.slane %v1605, %v1609
        %v1617 = vunpack.c.l.b16 %v1600
        %v1618 = vunpack.c.l.b16 %v1601
        %v1619 = vunpack.c.l.b16 %v1602
        %v1620 = vunpack.c.l.b16 %v1603
        %v1621 = vunpack.c.l.b16 %v1604
        %v1622 = vpack.c.b16 %v1618, %v1617
        %v1623 = vpack.c.b16 %v1620, %v1619
        %v1624 = vpack.c.b16 %v1621, %v1621
        %vm1627 = vcmask 293888
        %v1629 = vsel %vm1627, %v1584, 0
        %v1632 = vsel %vm1627, %v1585, 0
        %v1635 = vsel %vm1627, %v1586, 0
        %v1638 = vsel %vm1627, %v1587, 0
        %v1641 = vsel %vm1627, %v1588, 0
        %v1644 = vsel %vm1627, %v1589, 0
        %v1647 = vsel %vm1627, %v1590, 0
        %v1650 = vsel %vm1627, %v1591, 0
        %v1653 = vsel %vm1627, %v1592, 0
        %v1656 = vsel %vm1627, %v1593, 0
        %v1659 = vsel %vm1627, %v1594, 0
        %v1662 = vsel %vm1627, %v1595, 0
        %v1665 = vsel %vm1627, %v1596, 0
        %v1668 = vsel %vm1627, %v1597, 0
        %v1671 = vsel %vm1627, %v1598, 0
        %v1674 = vsel %vm1627, %v1599, 0
        %vm1676 = vcmask 1041408
        %v1678 = vsel %vm1676, %v1624, 0
        %1680 = vmatprep.subr.bf16.mxu0 0
        %1681 = vmatpush1.bf16.msra.mxu0 %v1622
        %1682 = vmatprep.subr.bf16.mxu0 0
        %1683 = vmatpush1.bf16.msra.mxu0 %v1623
        %1684 = vmatprep.subr.bf16.mxu0 0
        %1685 = vmatpush1.bf16.msra.mxu0 %v1678
        %1686 = vmatprep.subr.bf16.mxu0 0
        %1687 = vmatpush1.bf16.msra.mxu0 0
        %1688 = vmatprep.subr.bf16.mxu0 0
        %1689 = vmatpush1.bf16.msra.mxu0 0
        %1690 = vmatprep.subr.bf16.mxu0 0
        %1691 = vmatpush1.bf16.msra.mxu0 0
        %1692 = vmatprep.subr.bf16.mxu0 0
        %1693 = vmatpush1.bf16.msra.mxu0 0
        %1694 = vmatprep.subr.bf16.mxu0 0
        %1695 = vmatpush1.bf16.msra.mxu0 0
        %1696 = vmatprep.subr.bf16.mxu0 0
        %1697 = vmatpush1.bf16.msra.mxu0 0
        %1698 = vmatprep.subr.bf16.mxu0 0
        %1699 = vmatpush1.bf16.msra.mxu0 0
        %1700 = vmatprep.subr.bf16.mxu0 0
        %1701 = vmatpush1.bf16.msra.mxu0 0
        %1702 = vmatprep.subr.bf16.mxu0 0
        %1703 = vmatpush1.bf16.msra.mxu0 0
        %1704 = vmatprep.subr.bf16.mxu0 0
        %1705 = vmatpush1.bf16.msra.mxu0 0
        %1706 = vmatprep.subr.bf16.mxu0 0
        %1707 = vmatpush1.bf16.msra.mxu0 0
        %1708 = vmatprep.subr.bf16.mxu0 0
        %1709 = vmatpush1.bf16.msra.mxu0 0
        %1710 = vmatprep.subr.bf16.mxu0 0
        %1711 = vmatpush1.bf16.msra.mxu0 0
        %1712 = vmatprep.mubr.bf16.mxu0 0
        %1713 = vmatmul.mubr.bf16.gmra.mrb[0].mxu0 %v1629
        %v1714 = vpop.f32.mrb[0].mxu0
        %v1715 = vadd.f32 %v1610, %v1714
        %v1716 = vpop.f32.mrb[0].mxu0
        %v1717 = vpop.f32.mrb[0].mxu0
        %v1718 = vadd.f32 %v1610, %v1717
        %v1719 = vpop.f32.mrb[0].mxu0
        %1720 = vmatprep.mubr.bf16.mxu0 0
        %1721 = vmatmul.mubr.bf16.gmra.mrb[0].mxu0 %v1632
        %v1722 = vpop.f32.mrb[0].mxu0
        %v1723 = vadd.f32 %v1610, %v1722
        %v1724 = vpop.f32.mrb[0].mxu0
        %v1725 = vpop.f32.mrb[0].mxu0
        %v1726 = vadd.f32 %v1610, %v1725
        %v1727 = vpop.f32.mrb[0].mxu0
        %1728 = vmatprep.mubr.bf16.mxu0 0
        %1729 = vmatmul.mubr.bf16.gmra.mrb[0].mxu0 %v1635
        %v1730 = vpop.f32.mrb[0].mxu0
        %v1731 = vadd.f32 %v1610, %v1730
        %v1732 = vpop.f32.mrb[0].mxu0
        %v1733 = vpop.f32.mrb[0].mxu0
        %v1734 = vadd.f32 %v1610, %v1733
        %v1735 = vpop.f32.mrb[0].mxu0
        %1736 = vmatprep.mubr.bf16.mxu0 0
        %1737 = vmatmul.mubr.bf16.gmra.mrb[0].mxu0 %v1638
        %v1738 = vpop.f32.mrb[0].mxu0
        %v1739 = vadd.f32 %v1610, %v1738
        %v1740 = vpop.f32.mrb[0].mxu0
        %v1741 = vpop.f32.mrb[0].mxu0
        %v1742 = vadd.f32 %v1610, %v1741
        %v1743 = vpop.f32.mrb[0].mxu0
        %1744 = vmatprep.mubr.bf16.mxu0 0
        %1745 = vmatmul.mubr.bf16.gmra.mrb[0].mxu0 %v1641
        %v1746 = vpop.f32.mrb[0].mxu0
        %v1747 = vadd.f32 %v1610, %v1746
        %v1748 = vpop.f32.mrb[0].mxu0
        %v1749 = vpop.f32.mrb[0].mxu0
        %v1750 = vadd.f32 %v1610, %v1749
        %v1751 = vpop.f32.mrb[0].mxu0
        %1752 = vmatprep.mubr.bf16.mxu0 0
        %1753 = vmatmul.mubr.bf16.gmra.mrb[0].mxu0 %v1644
        %v1754 = vpop.f32.mrb[0].mxu0
        %v1755 = vadd.f32 %v1610, %v1754
        %v1756 = vpop.f32.mrb[0].mxu0
        %v1757 = vpop.f32.mrb[0].mxu0
        %v1758 = vadd.f32 %v1610, %v1757
        %v1759 = vpop.f32.mrb[0].mxu0
        %1760 = vmatprep.mubr.bf16.mxu0 0
        %1761 = vmatmul.mubr.bf16.gmra.mrb[0].mxu0 %v1647
        %v1762 = vpop.f32.mrb[0].mxu0
        %v1763 = vadd.f32 %v1610, %v1762
        %v1764 = vpop.f32.mrb[0].mxu0
        %v1765 = vpop.f32.mrb[0].mxu0
        %v1766 = vadd.f32 %v1610, %v1765
        %v1767 = vpop.f32.mrb[0].mxu0
        %1768 = vmatprep.mubr.bf16.mxu0 0
        %1769 = vmatmul.mubr.bf16.gmra.mrb[0].mxu0 %v1650
        %v1770 = vpop.f32.mrb[0].mxu0
        %v1771 = vadd.f32 %v1610, %v1770
        %v1772 = vpop.f32.mrb[0].mxu0
        %v1773 = vpop.f32.mrb[0].mxu0
        %v1774 = vadd.f32 %v1610, %v1773
        %v1775 = vpop.f32.mrb[0].mxu0
        %1776 = vmatprep.mubr.bf16.mxu0 0
        %1777 = vmatmul.mubr.bf16.gmra.mrb[0].mxu0 %v1653
        %v1778 = vpop.f32.mrb[0].mxu0
        %v1779 = vadd.f32 %v1610, %v1778
        %v1780 = vpop.f32.mrb[0].mxu0
        %v1781 = vpop.f32.mrb[0].mxu0
        %v1782 = vadd.f32 %v1610, %v1781
        %v1783 = vpop.f32.mrb[0].mxu0
        %1784 = vmatprep.mubr.bf16.mxu0 0
        %1785 = vmatmul.mubr.bf16.gmra.mrb[0].mxu0 %v1656
        %v1786 = vpop.f32.mrb[0].mxu0
        %v1787 = vadd.f32 %v1610, %v1786
        %v1788 = vpop.f32.mrb[0].mxu0
        %v1789 = vpop.f32.mrb[0].mxu0
        %v1790 = vadd.f32 %v1610, %v1789
        %v1791 = vpop.f32.mrb[0].mxu0
        %1792 = vmatprep.mubr.bf16.mxu0 0
        %1793 = vmatmul.mubr.bf16.gmra.mrb[0].mxu0 %v1659
        %v1794 = vpop.f32.mrb[0].mxu0
        %v1795 = vadd.f32 %v1610, %v1794
        %v1796 = vpop.f32.mrb[0].mxu0
        %v1797 = vpop.f32.mrb[0].mxu0
        %v1798 = vadd.f32 %v1610, %v1797
        %v1799 = vpop.f32.mrb[0].mxu0
        %1800 = vmatprep.mubr.bf16.mxu0 0
        %1801 = vmatmul.mubr.bf16.gmra.mrb[0].mxu0 %v1662
        %v1802 = vpop.f32.mrb[0].mxu0
        %v1803 = vadd.f32 %v1610, %v1802
        %v1804 = vpop.f32.mrb[0].mxu0
        %v1805 = vpop.f32.mrb[0].mxu0
        %v1806 = vadd.f32 %v1610, %v1805
        %v1807 = vpop.f32.mrb[0].mxu0
        %1808 = vmatprep.mubr.bf16.mxu0 0
        %1809 = vmatmul.mubr.bf16.gmra.mrb[0].mxu0 %v1665
        %v1810 = vpop.f32.mrb[0].mxu0
        %v1811 = vadd.f32 %v1610, %v1810
        %v1812 = vpop.f32.mrb[0].mxu0
        %v1813 = vpop.f32.mrb[0].mxu0
        %v1814 = vadd.f32 %v1610, %v1813
        %v1815 = vpop.f32.mrb[0].mxu0
        %1816 = vmatprep.mubr.bf16.mxu0 0
        %1817 = vmatmul.mubr.bf16.gmra.mrb[0].mxu0 %v1668
        %v1818 = vpop.f32.mrb[0].mxu0
        %v1819 = vadd.f32 %v1610, %v1818
        %v1820 = vpop.f32.mrb[0].mxu0
        %v1821 = vpop.f32.mrb[0].mxu0
        %v1822 = vadd.f32 %v1610, %v1821
        %v1823 = vpop.f32.mrb[0].mxu0
        %1824 = vmatprep.mubr.bf16.mxu0 0
        %1825 = vmatmul.mubr.bf16.gmra.mrb[0].mxu0 %v1671
        %v1826 = vpop.f32.mrb[0].mxu0
        %v1827 = vadd.f32 %v1610, %v1826
        %v1828 = vpop.f32.mrb[0].mxu0
        %v1829 = vpop.f32.mrb[0].mxu0
        %v1830 = vadd.f32 %v1610, %v1829
        %v1831 = vpop.f32.mrb[0].mxu0
        %1832 = vmatprep.mubr.bf16.mxu0 0
        %1833 = vmatmul.mubr.bf16.gmra.mrb[0].mxu0 %v1674
        %v1834 = vpop.f32.mrb[0].mxu0
        %v1835 = vadd.f32 %v1610, %v1834
        %v1836 = vpop.f32.mrb[0].mxu0
        %v1837 = vpop.f32.mrb[0].mxu0
        %v1838 = vadd.f32 %v1610, %v1837
        %v1839 = vpop.f32.mrb[0].mxu0
        %1840 = vdwg.mxu0
        %v1841 = vtanh.pop %v1715
        %v1842 = vtanh.pop %v1718
        %v1843 = vtanh.pop %v1723
        %v1844 = vtanh.pop %v1726
        %v1845 = vtanh.pop %v1731
        %v1846 = vtanh.pop %v1734
        %v1847 = vtanh.pop %v1739
        %v1848 = vtanh.pop %v1742
        %v1849 = vtanh.pop %v1747
        %v1850 = vtanh.pop %v1750
        %v1851 = vtanh.pop %v1755
        %v1852 = vtanh.pop %v1758
        %v1853 = vtanh.pop %v1763
        %v1854 = vtanh.pop %v1766
        %v1855 = vtanh.pop %v1771
        %v1856 = vtanh.pop %v1774
        %v1857 = vtanh.pop %v1779
        %v1858 = vtanh.pop %v1782
        %v1859 = vtanh.pop %v1787
        %v1860 = vtanh.pop %v1790
        %v1861 = vtanh.pop %v1795
        %v1862 = vtanh.pop %v1798
        %v1863 = vtanh.pop %v1803
        %v1864 = vtanh.pop %v1806
        %v1865 = vtanh.pop %v1811
        %v1866 = vtanh.pop %v1814
        %v1867 = vtanh.pop %v1819
        %v1868 = vtanh.pop %v1822
        %v1869 = vtanh.pop %v1827
        %v1870 = vtanh.pop %v1830
        %v1871 = vtanh.pop %v1835
        %v1872 = vtanh.pop %v1838
        %vm1873 = vcmp.ge.f32.partialorder %v1841, 0.0
        %vm1874 = vcmp.ge.f32.partialorder %v1842, 0.0
        %vm1875 = vcmp.ge.f32.partialorder %v1843, 0.0
        %vm1876 = vcmp.ge.f32.partialorder %v1844, 0.0
        %vm1877 = vcmp.ge.f32.partialorder %v1845, 0.0
        %vm1878 = vcmp.ge.f32.partialorder %v1846, 0.0
        %vm1879 = vcmp.ge.f32.partialorder %v1847, 0.0
        %vm1880 = vcmp.ge.f32.partialorder %v1848, 0.0
        %vm1881 = vcmp.ge.f32.partialorder %v1849, 0.0
        %vm1882 = vcmp.ge.f32.partialorder %v1850, 0.0
        %vm1883 = vcmp.ge.f32.partialorder %v1851, 0.0
        %vm1884 = vcmp.ge.f32.partialorder %v1852, 0.0
        %vm1885 = vcmp.ge.f32.partialorder %v1853, 0.0
        %vm1886 = vcmp.ge.f32.partialorder %v1854, 0.0
        %vm1887 = vcmp.ge.f32.partialorder %v1855, 0.0
        %vm1888 = vcmp.ge.f32.partialorder %v1856, 0.0
        %vm1889 = vcmp.ge.f32.partialorder %v1857, 0.0
        %vm1890 = vcmp.ge.f32.partialorder %v1858, 0.0
        %vm1891 = vcmp.ge.f32.partialorder %v1859, 0.0
        %vm1892 = vcmp.ge.f32.partialorder %v1860, 0.0
        %vm1893 = vcmp.ge.f32.partialorder %v1861, 0.0
        %vm1894 = vcmp.ge.f32.partialorder %v1862, 0.0
        %vm1895 = vcmp.ge.f32.partialorder %v1863, 0.0
        %vm1896 = vcmp.ge.f32.partialorder %v1864, 0.0
        %vm1897 = vcmp.ge.f32.partialorder %v1865, 0.0
        %vm1898 = vcmp.ge.f32.partialorder %v1866, 0.0
        %vm1899 = vcmp.ge.f32.partialorder %v1867, 0.0
        %vm1900 = vcmp.ge.f32.partialorder %v1868, 0.0
        %vm1901 = vcmp.ge.f32.partialorder %v1869, 0.0
        %vm1902 = vcmp.ge.f32.partialorder %v1870, 0.0
        %vm1903 = vcmp.ge.f32.partialorder %v1871, 0.0
        %vm1904 = vcmp.ge.f32.partialorder %v1872, 0.0
        %v1905 = vmul.f32 %v1841, 0.2
        %v1906 = vmul.f32 %v1842, 0.2
        %v1907 = vmul.f32 %v1843, 0.2
        %v1908 = vmul.f32 %v1844, 0.2
        %v1909 = vmul.f32 %v1845, 0.2
        %v1910 = vmul.f32 %v1846, 0.2
        %v1911 = vmul.f32 %v1847, 0.2
        %v1912 = vmul.f32 %v1848, 0.2
        %v1913 = vmul.f32 %v1849, 0.2
        %v1914 = vmul.f32 %v1850, 0.2
        %v1915 = vmul.f32 %v1851, 0.2
        %v1916 = vmul.f32 %v1852, 0.2
        %v1917 = vmul.f32 %v1853, 0.2
        %v1918 = vmul.f32 %v1854, 0.2
        %v1919 = vmul.f32 %v1855, 0.2
        %v1920 = vmul.f32 %v1856, 0.2
        %v1921 = vmul.f32 %v1857, 0.2
        %v1922 = vmul.f32 %v1858, 0.2
        %v1923 = vmul.f32 %v1859, 0.2
        %v1924 = vmul.f32 %v1860, 0.2
        %v1925 = vmul.f32 %v1861, 0.2
        %v1926 = vmul.f32 %v1862, 0.2
        %v1927 = vmul.f32 %v1863, 0.2
        %v1928 = vmul.f32 %v1864, 0.2
        %v1929 = vmul.f32 %v1865, 0.2
        %v1930 = vmul.f32 %v1866, 0.2
        %v1931 = vmul.f32 %v1867, 0.2
        %v1932 = vmul.f32 %v1868, 0.2
        %v1933 = vmul.f32 %v1869, 0.2
        %v1934 = vmul.f32 %v1870, 0.2
        %v1935 = vmul.f32 %v1871, 0.2
        %v1936 = vmul.f32 %v1872, 0.2
        %v1937 = vsel %vm1873, %v1841, %v1905
        %v1938 = vsel %vm1874, %v1842, %v1906
        %v1939 = vsel %vm1875, %v1843, %v1907
        %v1940 = vsel %vm1876, %v1844, %v1908
        %v1941 = vsel %vm1877, %v1845, %v1909
        %v1942 = vsel %vm1878, %v1846, %v1910
        %v1943 = vsel %vm1879, %v1847, %v1911
        %v1944 = vsel %vm1880, %v1848, %v1912
        %v1945 = vsel %vm1881, %v1849, %v1913
        %v1946 = vsel %vm1882, %v1850, %v1914
        %v1947 = vsel %vm1883, %v1851, %v1915
        %v1948 = vsel %vm1884, %v1852, %v1916
        %v1949 = vsel %vm1885, %v1853, %v1917
        %v1950 = vsel %vm1886, %v1854, %v1918
        %v1951 = vsel %vm1887, %v1855, %v1919
        %v1952 = vsel %vm1888, %v1856, %v1920
        %v1953 = vsel %vm1889, %v1857, %v1921
        %v1954 = vsel %vm1890, %v1858, %v1922
        %v1955 = vsel %vm1891, %v1859, %v1923
        %v1956 = vsel %vm1892, %v1860, %v1924
        %v1957 = vsel %vm1893, %v1861, %v1925
        %v1958 = vsel %vm1894, %v1862, %v1926
        %v1959 = vsel %vm1895, %v1863, %v1927
        %v1960 = vsel %vm1896, %v1864, %v1928
        %v1961 = vsel %vm1897, %v1865, %v1929
        %v1962 = vsel %vm1898, %v1866, %v1930
        %v1963 = vsel %vm1899, %v1867, %v1931
        %v1964 = vsel %vm1900, %v1868, %v1932
        %v1965 = vsel %vm1901, %v1869, %v1933
        %v1966 = vsel %vm1902, %v1870, %v1934
        %v1967 = vsel %vm1903, %v1871, %v1935
        %v1968 = vsel %vm1904, %v1872, %v1936
        %v1985 = vrot.slane %v1939, 7
        %vm1986 = vcmask 1041409
        %v1987 = vsel %vm1986, %v1985, %v1937
        %v1988 = vrot.slane %v1941, 6
        %vm1989 = vcmask 1042434
        %v1990 = vsel %vm1989, %v1988, %v1987
        %v1991 = vrot.slane %v1943, 5
        %vm1992 = vcmask 1043459
        %v1993 = vsel %vm1992, %v1991, %v1990
        %v1994 = vrot.slane %v1945, 4
        %vm1995 = vcmask 1044484
        %v1996 = vsel %vm1995, %v1994, %v1993
        %v1997 = vrot.slane %v1947, 3
        %vm1998 = vcmask 1045509
        %v1999 = vsel %vm1998, %v1997, %v1996
        %v2000 = vrot.slane %v1949, 2
        %vm2001 = vcmask 1046534
        %v2002 = vsel %vm2001, %v2000, %v1999
        %v2003 = vrot.slane %v1951, 1
        %vm2004 = vcmask 1047559
        %v2005 = vsel %vm2004, %v2003, %v2002
        %v2006 = vrot.slane %v1955, 7
        %v2007 = vsel %vm1986, %v2006, %v1953
        %v2008 = vrot.slane %v1957, 6
        %v2009 = vsel %vm1989, %v2008, %v2007
        %v2010 = vrot.slane %v1959, 5
        %v2011 = vsel %vm1992, %v2010, %v2009
        %v2012 = vrot.slane %v1961, 4
        %v2013 = vsel %vm1995, %v2012, %v2011
        %v2014 = vrot.slane %v1963, 3
        %v2015 = vsel %vm1998, %v2014, %v2013
        %v2016 = vrot.slane %v1965, 2
        %v2017 = vsel %vm2001, %v2016, %v2015
        %v2018 = vrot.slane %v1967, 1
        %v2019 = vsel %vm2004, %v2018, %v2017
        %v2022 = vrot.slane %v1937, 1
        %v2023 = vsel %vm1986, %v1939, %v2022
        %v2024 = vrot.slane %v1941, 7
        %v2025 = vsel %vm1989, %v2024, %v2023
        %v2026 = vrot.slane %v1943, 6
        %v2027 = vsel %vm1992, %v2026, %v2025
        %v2028 = vrot.slane %v1945, 5
        %v2029 = vsel %vm1995, %v2028, %v2027
        %v2030 = vrot.slane %v1947, 4
        %v2031 = vsel %vm1998, %v2030, %v2029
        %v2032 = vrot.slane %v1949, 3
        %v2033 = vsel %vm2001, %v2032, %v2031
        %v2034 = vrot.slane %v1951, 2
        %v2035 = vsel %vm2004, %v2034, %v2033
        %v2036 = vrot.slane %v1953, 1
        %v2037 = vsel %vm1986, %v1955, %v2036
        %v2038 = vrot.slane %v1957, 7
        %v2039 = vsel %vm1989, %v2038, %v2037
        %v2040 = vrot.slane %v1959, 6
        %v2041 = vsel %vm1992, %v2040, %v2039
        %v2042 = vrot.slane %v1961, 5
        %v2043 = vsel %vm1995, %v2042, %v2041
        %v2044 = vrot.slane %v1963, 4
        %v2045 = vsel %vm1998, %v2044, %v2043
        %v2046 = vrot.slane %v1965, 3
        %v2047 = vsel %vm2001, %v2046, %v2045
        %v2048 = vrot.slane %v1967, 2
        %v2049 = vsel %vm2004, %v2048, %v2047
        %2050 = vrot.lane.b32.xlu0 %v2035, 8
        %v2051 = vpop.permute.xlu0 %2050
        %2052 = vrot.lane.b32.xlu0 %v2049, 8
        %v2053 = vpop.permute.xlu0 %2052
        %v2056 = vrot.slane %v1937, 2
        %v2057 = vrot.slane %v1939, 1
        %v2058 = vsel %vm1986, %v2057, %v2056
        %v2059 = vsel %vm1989, %v1941, %v2058
        %v2060 = vrot.slane %v1943, 7
        %v2061 = vsel %vm1992, %v2060, %v2059
        %v2062 = vrot.slane %v1945, 6
        %v2063 = vsel %vm1995, %v2062, %v2061
        %v2064 = vrot.slane %v1947, 5
        %v2065 = vsel %vm1998, %v2064, %v2063
        %v2066 = vrot.slane %v1949, 4
        %v2067 = vsel %vm2001, %v2066, %v2065
        %v2068 = vrot.slane %v1951, 3
        %v2069 = vsel %vm2004, %v2068, %v2067
        %v2070 = vrot.slane %v1953, 2
        %v2071 = vrot.slane %v1955, 1
        %v2072 = vsel %vm1986, %v2071, %v2070
        %v2073 = vsel %vm1989, %v1957, %v2072
        %v2074 = vrot.slane %v1959, 7
        %v2075 = vsel %vm1992, %v2074, %v2073
        %v2076 = vrot.slane %v1961, 6
        %v2077 = vsel %vm1995, %v2076, %v2075
        %v2078 = vrot.slane %v1963, 5
        %v2079 = vsel %vm1998, %v2078, %v2077
        %v2080 = vrot.slane %v1965, 4
        %v2081 = vsel %vm2001, %v2080, %v2079
        %v2082 = vrot.slane %v1967, 3
        %v2083 = vsel %vm2004, %v2082, %v2081
        %2084 = vrot.lane.b32.xlu0 %v2069, 16
        %v2085 = vpop.permute.xlu0 %2084
        %2086 = vrot.lane.b32.xlu0 %v2083, 16
        %v2087 = vpop.permute.xlu0 %2086
        %v2090 = vrot.slane %v1937, 3
        %v2091 = vrot.slane %v1939, 2
        %v2092 = vsel %vm1986, %v2091, %v2090
        %v2093 = vrot.slane %v1941, 1
        %v2094 = vsel %vm1989, %v2093, %v2092
        %v2095 = vsel %vm1992, %v1943, %v2094
        %v2096 = vrot.slane %v1945, 7
        %v2097 = vsel %vm1995, %v2096, %v2095
        %v2098 = vrot.slane %v1947, 6
        %v2099 = vsel %vm1998, %v2098, %v2097
        %v2100 = vrot.slane %v1949, 5
        %v2101 = vsel %vm2001, %v2100, %v2099
        %v2102 = vrot.slane %v1951, 4
        %v2103 = vsel %vm2004, %v2102, %v2101
        %v2104 = vrot.slane %v1953, 3
        %v2105 = vrot.slane %v1955, 2
        %v2106 = vsel %vm1986, %v2105, %v2104
        %v2107 = vrot.slane %v1957, 1
        %v2108 = vsel %vm1989, %v2107, %v2106
        %v2109 = vsel %vm1992, %v1959, %v2108
        %v2110 = vrot.slane %v1961, 7
        %v2111 = vsel %vm1995, %v2110, %v2109
        %v2112 = vrot.slane %v1963, 6
        %v2113 = vsel %vm1998, %v2112, %v2111
        %v2114 = vrot.slane %v1965, 5
        %v2115 = vsel %vm2001, %v2114, %v2113
        %v2116 = vrot.slane %v1967, 4
        %v2117 = vsel %vm2004, %v2116, %v2115
        %2118 = vrot.lane.b32.xlu0 %v2103, 24
        %v2119 = vpop.permute.xlu0 %2118
        %2120 = vrot.lane.b32.xlu0 %v2117, 24
        %v2121 = vpop.permute.xlu0 %2120
        %v2124 = vrot.slane %v1937, 4
        %v2125 = vrot.slane %v1939, 3
        %v2126 = vsel %vm1986, %v2125, %v2124
        %v2127 = vrot.slane %v1941, 2
        %v2128 = vsel %vm1989, %v2127, %v2126
        %v2129 = vrot.slane %v1943, 1
        %v2130 = vsel %vm1992, %v2129, %v2128
        %v2131 = vsel %vm1995, %v1945, %v2130
        %v2132 = vrot.slane %v1947, 7
        %v2133 = vsel %vm1998, %v2132, %v2131
        %v2134 = vrot.slane %v1949, 6
        %v2135 = vsel %vm2001, %v2134, %v2133
        %v2136 = vrot.slane %v1951, 5
        %v2137 = vsel %vm2004, %v2136, %v2135
        %v2138 = vrot.slane %v1953, 4
        %v2139 = vrot.slane %v1955, 3
        %v2140 = vsel %vm1986, %v2139, %v2138
        %v2141 = vrot.slane %v1957, 2
        %v2142 = vsel %vm1989, %v2141, %v2140
        %v2143 = vrot.slane %v1959, 1
        %v2144 = vsel %vm1992, %v2143, %v2142
        %v2145 = vsel %vm1995, %v1961, %v2144
        %v2146 = vrot.slane %v1963, 7
        %v2147 = vsel %vm1998, %v2146, %v2145
        %v2148 = vrot.slane %v1965, 6
        %v2149 = vsel %vm2001, %v2148, %v2147
        %v2150 = vrot.slane %v1967, 5
        %v2151 = vsel %vm2004, %v2150, %v2149
        %2152 = vrot.lane.b32.xlu0 %v2137, 32
        %v2153 = vpop.permute.xlu0 %2152
        %2154 = vrot.lane.b32.xlu0 %v2151, 32
        %v2155 = vpop.permute.xlu0 %2154
        %v2158 = vrot.slane %v1937, 5
        %v2159 = vrot.slane %v1939, 4
        %v2160 = vsel %vm1986, %v2159, %v2158
        %v2161 = vrot.slane %v1941, 3
        %v2162 = vsel %vm1989, %v2161, %v2160
        %v2163 = vrot.slane %v1943, 2
        %v2164 = vsel %vm1992, %v2163, %v2162
        %v2165 = vrot.slane %v1945, 1
        %v2166 = vsel %vm1995, %v2165, %v2164
        %v2167 = vsel %vm1998, %v1947, %v2166
        %v2168 = vrot.slane %v1949, 7
        %v2169 = vsel %vm2001, %v2168, %v2167
        %v2170 = vrot.slane %v1951, 6
        %v2171 = vsel %vm2004, %v2170, %v2169
        %v2172 = vrot.slane %v1953, 5
        %v2173 = vrot.slane %v1955, 4
        %v2174 = vsel %vm1986, %v2173, %v2172
        %v2175 = vrot.slane %v1957, 3
        %v2176 = vsel %vm1989, %v2175, %v2174
        %v2177 = vrot.slane %v1959, 2
        %v2178 = vsel %vm1992, %v2177, %v2176
        %v2179 = vrot.slane %v1961, 1
        %v2180 = vsel %vm1995, %v2179, %v2178
        %v2181 = vsel %vm1998, %v1963, %v2180
        %v2182 = vrot.slane %v1965, 7
        %v2183 = vsel %vm2001, %v2182, %v2181
        %v2184 = vrot.slane %v1967, 6
        %v2185 = vsel %vm2004, %v2184, %v2183
        %2186 = vrot.lane.b32.xlu0 %v2171, 40
        %v2187 = vpop.permute.xlu0 %2186
        %2188 = vrot.lane.b32.xlu0 %v2185, 40
        %v2189 = vpop.permute.xlu0 %2188
        %v2192 = vrot.slane %v1937, 6
        %v2193 = vrot.slane %v1939, 5
        %v2194 = vsel %vm1986, %v2193, %v2192
        %v2195 = vrot.slane %v1941, 4
        %v2196 = vsel %vm1989, %v2195, %v2194
        %v2197 = vrot.slane %v1943, 3
        %v2198 = vsel %vm1992, %v2197, %v2196
        %v2199 = vrot.slane %v1945, 2
        %v2200 = vsel %vm1995, %v2199, %v2198
        %v2201 = vrot.slane %v1947, 1
        %v2202 = vsel %vm1998, %v2201, %v2200
        %v2203 = vsel %vm2001, %v1949, %v2202
        %v2204 = vrot.slane %v1951, 7
        %v2205 = vsel %vm2004, %v2204, %v2203
        %v2206 = vrot.slane %v1953, 6
        %v2207 = vrot.slane %v1955, 5
        %v2208 = vsel %vm1986, %v2207, %v2206
        %v2209 = vrot.slane %v1957, 4
        %v2210 = vsel %vm1989, %v2209, %v2208
        %v2211 = vrot.slane %v1959, 3
        %v2212 = vsel %vm1992, %v2211, %v2210
        %v2213 = vrot.slane %v1961, 2
        %v2214 = vsel %vm1995, %v2213, %v2212
        %v2215 = vrot.slane %v1963, 1
        %v2216 = vsel %vm1998, %v2215, %v2214
        %v2217 = vsel %vm2001, %v1965, %v2216
        %v2218 = vrot.slane %v1967, 7
        %v2219 = vsel %vm2004, %v2218, %v2217
        %2220 = vrot.lane.b32.xlu0 %v2205, 48
        %v2221 = vpop.permute.xlu0 %2220
        %2222 = vrot.lane.b32.xlu0 %v2219, 48
        %v2223 = vpop.permute.xlu0 %2222
        %v2226 = vrot.slane %v1937, 7
        %v2227 = vrot.slane %v1939, 6
        %v2228 = vsel %vm1986, %v2227, %v2226
        %v2229 = vrot.slane %v1941, 5
        %v2230 = vsel %vm1989, %v2229, %v2228
        %v2231 = vrot.slane %v1943, 4
        %v2232 = vsel %vm1992, %v2231, %v2230
        %v2233 = vrot.slane %v1945, 3
        %v2234 = vsel %vm1995, %v2233, %v2232
        %v2235 = vrot.slane %v1947, 2
        %v2236 = vsel %vm1998, %v2235, %v2234
        %v2237 = vrot.slane %v1949, 1
        %v2238 = vsel %vm2001, %v2237, %v2236
        %v2239 = vsel %vm2004, %v1951, %v2238
        %v2240 = vrot.slane %v1953, 7
        %v2241 = vrot.slane %v1955, 6
        %v2242 = vsel %vm1986, %v2241, %v2240
        %v2243 = vrot.slane %v1957, 5
        %v2244 = vsel %vm1989, %v2243, %v2242
        %v2245 = vrot.slane %v1959, 4
        %v2246 = vsel %vm1992, %v2245, %v2244
        %v2247 = vrot.slane %v1961, 3
        %v2248 = vsel %vm1995, %v2247, %v2246
        %v2249 = vrot.slane %v1963, 2
        %v2250 = vsel %vm1998, %v2249, %v2248
        %v2251 = vrot.slane %v1965, 1
        %v2252 = vsel %vm2001, %v2251, %v2250
        %v2253 = vsel %vm2004, %v1967, %v2252
        %2254 = vrot.lane.b32.xlu0 %v2239, 56
        %v2255 = vpop.permute.xlu0 %2254
        %2256 = vrot.lane.b32.xlu0 %v2253, 56
        %v2257 = vpop.permute.xlu0 %2256
        %v2276 = vrot.slane %v1940, 7
        %v2277 = vsel %vm1986, %v2276, %v1938
        %v2278 = vrot.slane %v1942, 6
        %v2279 = vsel %vm1989, %v2278, %v2277
        %v2280 = vrot.slane %v1944, 5
        %v2281 = vsel %vm1992, %v2280, %v2279
        %v2282 = vrot.slane %v1946, 4
        %v2283 = vsel %vm1995, %v2282, %v2281
        %v2284 = vrot.slane %v1948, 3
        %v2285 = vsel %vm1998, %v2284, %v2283
        %v2286 = vrot.slane %v1950, 2
        %v2287 = vsel %vm2001, %v2286, %v2285
        %v2288 = vrot.slane %v1952, 1
        %v2289 = vsel %vm2004, %v2288, %v2287
        %v2290 = vrot.slane %v1956, 7
        %v2291 = vsel %vm1986, %v2290, %v1954
        %v2292 = vrot.slane %v1958, 6
        %v2293 = vsel %vm1989, %v2292, %v2291
        %v2294 = vrot.slane %v1960, 5
        %v2295 = vsel %vm1992, %v2294, %v2293
        %v2296 = vrot.slane %v1962, 4
        %v2297 = vsel %vm1995, %v2296, %v2295
        %v2298 = vrot.slane %v1964, 3
        %v2299 = vsel %vm1998, %v2298, %v2297
        %v2300 = vrot.slane %v1966, 2
        %v2301 = vsel %vm2001, %v2300, %v2299
        %v2302 = vrot.slane %v1968, 1
        %v2303 = vsel %vm2004, %v2302, %v2301
        %2304 = vrot.lane.b32.xlu0 %v2289, 64
        %v2305 = vpop.permute.xlu0 %2304
        %2306 = vrot.lane.b32.xlu0 %v2303, 64
        %v2307 = vpop.permute.xlu0 %2306
        %v2310 = vrot.slane %v1938, 1
        %v2311 = vsel %vm1986, %v1940, %v2310
        %v2312 = vrot.slane %v1942, 7
        %v2313 = vsel %vm1989, %v2312, %v2311
        %v2314 = vrot.slane %v1944, 6
        %v2315 = vsel %vm1992, %v2314, %v2313
        %v2316 = vrot.slane %v1946, 5
        %v2317 = vsel %vm1995, %v2316, %v2315
        %v2318 = vrot.slane %v1948, 4
        %v2319 = vsel %vm1998, %v2318, %v2317
        %v2320 = vrot.slane %v1950, 3
        %v2321 = vsel %vm2001, %v2320, %v2319
        %v2322 = vrot.slane %v1952, 2
        %v2323 = vsel %vm2004, %v2322, %v2321
        %v2324 = vrot.slane %v1954, 1
        %v2325 = vsel %vm1986, %v1956, %v2324
        %v2326 = vrot.slane %v1958, 7
        %v2327 = vsel %vm1989, %v2326, %v2325
        %v2328 = vrot.slane %v1960, 6
        %v2329 = vsel %vm1992, %v2328, %v2327
        %v2330 = vrot.slane %v1962, 5
        %v2331 = vsel %vm1995, %v2330, %v2329
        %v2332 = vrot.slane %v1964, 4
        %v2333 = vsel %vm1998, %v2332, %v2331
        %v2334 = vrot.slane %v1966, 3
        %v2335 = vsel %vm2001, %v2334, %v2333
        %v2336 = vrot.slane %v1968, 2
        %v2337 = vsel %vm2004, %v2336, %v2335
        %2338 = vrot.lane.b32.xlu0 %v2323, 72
        %v2339 = vpop.permute.xlu0 %2338
        %2340 = vrot.lane.b32.xlu0 %v2337, 72
        %v2341 = vpop.permute.xlu0 %2340
        %v2344 = vrot.slane %v1938, 2
        %v2345 = vrot.slane %v1940, 1
        %v2346 = vsel %vm1986, %v2345, %v2344
        %v2347 = vsel %vm1989, %v1942, %v2346
        %v2348 = vrot.slane %v1944, 7
        %v2349 = vsel %vm1992, %v2348, %v2347
        %v2350 = vrot.slane %v1946, 6
        %v2351 = vsel %vm1995, %v2350, %v2349
        %v2352 = vrot.slane %v1948, 5
        %v2353 = vsel %vm1998, %v2352, %v2351
        %v2354 = vrot.slane %v1950, 4
        %v2355 = vsel %vm2001, %v2354, %v2353
        %v2356 = vrot.slane %v1952, 3
        %v2357 = vsel %vm2004, %v2356, %v2355
        %v2358 = vrot.slane %v1954, 2
        %v2359 = vrot.slane %v1956, 1
        %v2360 = vsel %vm1986, %v2359, %v2358
        %v2361 = vsel %vm1989, %v1958, %v2360
        %v2362 = vrot.slane %v1960, 7
        %v2363 = vsel %vm1992, %v2362, %v2361
        %v2364 = vrot.slane %v1962, 6
        %v2365 = vsel %vm1995, %v2364, %v2363
        %v2366 = vrot.slane %v1964, 5
        %v2367 = vsel %vm1998, %v2366, %v2365
        %v2368 = vrot.slane %v1966, 4
        %v2369 = vsel %vm2001, %v2368, %v2367
        %v2370 = vrot.slane %v1968, 3
        %v2371 = vsel %vm2004, %v2370, %v2369
        %2372 = vrot.lane.b32.xlu0 %v2357, 80
        %v2373 = vpop.permute.xlu0 %2372
        %2374 = vrot.lane.b32.xlu0 %v2371, 80
        %v2375 = vpop.permute.xlu0 %2374
        %v2378 = vrot.slane %v1938, 3
        %v2379 = vrot.slane %v1940, 2
        %v2380 = vsel %vm1986, %v2379, %v2378
        %v2381 = vrot.slane %v1942, 1
        %v2382 = vsel %vm1989, %v2381, %v2380
        %v2383 = vsel %vm1992, %v1944, %v2382
        %v2384 = vrot.slane %v1946, 7
        %v2385 = vsel %vm1995, %v2384, %v2383
        %v2386 = vrot.slane %v1948, 6
        %v2387 = vsel %vm1998, %v2386, %v2385
        %v2388 = vrot.slane %v1950, 5
        %v2389 = vsel %vm2001, %v2388, %v2387
        %v2390 = vrot.slane %v1952, 4
        %v2391 = vsel %vm2004, %v2390, %v2389
        %v2392 = vrot.slane %v1954, 3
        %v2393 = vrot.slane %v1956, 2
        %v2394 = vsel %vm1986, %v2393, %v2392
        %v2395 = vrot.slane %v1958, 1
        %v2396 = vsel %vm1989, %v2395, %v2394
        %v2397 = vsel %vm1992, %v1960, %v2396
        %v2398 = vrot.slane %v1962, 7
        %v2399 = vsel %vm1995, %v2398, %v2397
        %v2400 = vrot.slane %v1964, 6
        %v2401 = vsel %vm1998, %v2400, %v2399
        %v2402 = vrot.slane %v1966, 5
        %v2403 = vsel %vm2001, %v2402, %v2401
        %v2404 = vrot.slane %v1968, 4
        %v2405 = vsel %vm2004, %v2404, %v2403
        %2406 = vrot.lane.b32.xlu0 %v2391, 88
        %v2407 = vpop.permute.xlu0 %2406
        %2408 = vrot.lane.b32.xlu0 %v2405, 88
        %v2409 = vpop.permute.xlu0 %2408
        %v2412 = vrot.slane %v1938, 4
        %v2413 = vrot.slane %v1940, 3
        %v2414 = vsel %vm1986, %v2413, %v2412
        %v2415 = vrot.slane %v1942, 2
        %v2416 = vsel %vm1989, %v2415, %v2414
        %v2417 = vrot.slane %v1944, 1
        %v2418 = vsel %vm1992, %v2417, %v2416
        %v2419 = vsel %vm1995, %v1946, %v2418
        %v2420 = vrot.slane %v1948, 7
        %v2421 = vsel %vm1998, %v2420, %v2419
        %v2422 = vrot.slane %v1950, 6
        %v2423 = vsel %vm2001, %v2422, %v2421
        %v2424 = vrot.slane %v1952, 5
        %v2425 = vsel %vm2004, %v2424, %v2423
        %v2426 = vrot.slane %v1954, 4
        %v2427 = vrot.slane %v1956, 3
        %v2428 = vsel %vm1986, %v2427, %v2426
        %v2429 = vrot.slane %v1958, 2
        %v2430 = vsel %vm1989, %v2429, %v2428
        %v2431 = vrot.slane %v1960, 1
        %v2432 = vsel %vm1992, %v2431, %v2430
        %v2433 = vsel %vm1995, %v1962, %v2432
        %v2434 = vrot.slane %v1964, 7
        %v2435 = vsel %vm1998, %v2434, %v2433
        %v2436 = vrot.slane %v1966, 6
        %v2437 = vsel %vm2001, %v2436, %v2435
        %v2438 = vrot.slane %v1968, 5
        %v2439 = vsel %vm2004, %v2438, %v2437
        %2440 = vrot.lane.b32.xlu0 %v2425, 96
        %v2441 = vpop.permute.xlu0 %2440
        %2442 = vrot.lane.b32.xlu0 %v2439, 96
        %v2443 = vpop.permute.xlu0 %2442
        %v2446 = vrot.slane %v1938, 5
        %v2447 = vrot.slane %v1940, 4
        %v2448 = vsel %vm1986, %v2447, %v2446
        %v2449 = vrot.slane %v1942, 3
        %v2450 = vsel %vm1989, %v2449, %v2448
        %v2451 = vrot.slane %v1944, 2
        %v2452 = vsel %vm1992, %v2451, %v2450
        %v2453 = vrot.slane %v1946, 1
        %v2454 = vsel %vm1995, %v2453, %v2452
        %v2455 = vsel %vm1998, %v1948, %v2454
        %v2456 = vrot.slane %v1950, 7
        %v2457 = vsel %vm2001, %v2456, %v2455
        %v2458 = vrot.slane %v1952, 6
        %v2459 = vsel %vm2004, %v2458, %v2457
        %v2460 = vrot.slane %v1954, 5
        %v2461 = vrot.slane %v1956, 4
        %v2462 = vsel %vm1986, %v2461, %v2460
        %v2463 = vrot.slane %v1958, 3
        %v2464 = vsel %vm1989, %v2463, %v2462
        %v2465 = vrot.slane %v1960, 2
        %v2466 = vsel %vm1992, %v2465, %v2464
        %v2467 = vrot.slane %v1962, 1
        %v2468 = vsel %vm1995, %v2467, %v2466
        %v2469 = vsel %vm1998, %v1964, %v2468
        %v2470 = vrot.slane %v1966, 7
        %v2471 = vsel %vm2001, %v2470, %v2469
        %v2472 = vrot.slane %v1968, 6
        %v2473 = vsel %vm2004, %v2472, %v2471
        %2474 = vrot.lane.b32.xlu0 %v2459, 104
        %v2475 = vpop.permute.xlu0 %2474
        %2476 = vrot.lane.b32.xlu0 %v2473, 104
        %v2477 = vpop.permute.xlu0 %2476
        %v2480 = vrot.slane %v1938, 6
        %v2481 = vrot.slane %v1940, 5
        %v2482 = vsel %vm1986, %v2481, %v2480
        %v2483 = vrot.slane %v1942, 4
        %v2484 = vsel %vm1989, %v2483, %v2482
        %v2485 = vrot.slane %v1944, 3
        %v2486 = vsel %vm1992, %v2485, %v2484
        %v2487 = vrot.slane %v1946, 2
        %v2488 = vsel %vm1995, %v2487, %v2486
        %v2489 = vrot.slane %v1948, 1
        %v2490 = vsel %vm1998, %v2489, %v2488
        %v2491 = vsel %vm2001, %v1950, %v2490
        %v2492 = vrot.slane %v1952, 7
        %v2493 = vsel %vm2004, %v2492, %v2491
        %v2494 = vrot.slane %v1954, 6
        %v2495 = vrot.slane %v1956, 5
        %v2496 = vsel %vm1986, %v2495, %v2494
        %v2497 = vrot.slane %v1958, 4
        %v2498 = vsel %vm1989, %v2497, %v2496
        %v2499 = vrot.slane %v1960, 3
        %v2500 = vsel %vm1992, %v2499, %v2498
        %v2501 = vrot.slane %v1962, 2
        %v2502 = vsel %vm1995, %v2501, %v2500
        %v2503 = vrot.slane %v1964, 1
        %v2504 = vsel %vm1998, %v2503, %v2502
        %v2505 = vsel %vm2001, %v1966, %v2504
        %v2506 = vrot.slane %v1968, 7
        %v2507 = vsel %vm2004, %v2506, %v2505
        %2508 = vrot.lane.b32.xlu0 %v2493, 112
        %v2509 = vpop.permute.xlu0 %2508
        %2510 = vrot.lane.b32.xlu0 %v2507, 112
        %v2511 = vpop.permute.xlu0 %2510
        %v2514 = vrot.slane %v1938, 7
        %v2515 = vrot.slane %v1940, 6
        %v2516 = vsel %vm1986, %v2515, %v2514
        %v2517 = vrot.slane %v1942, 5
        %v2518 = vsel %vm1989, %v2517, %v2516
        %v2519 = vrot.slane %v1944, 4
        %v2520 = vsel %vm1992, %v2519, %v2518
        %v2521 = vrot.slane %v1946, 3
        %v2522 = vsel %vm1995, %v2521, %v2520
        %v2523 = vrot.slane %v1948, 2
        %v2524 = vsel %vm1998, %v2523, %v2522
        %v2525 = vrot.slane %v1950, 1
        %v2526 = vsel %vm2001, %v2525, %v2524
        %v2527 = vsel %vm2004, %v1952, %v2526
        %v2528 = vrot.slane %v1954, 7
        %v2529 = vrot.slane %v1956, 6
        %v2530 = vsel %vm1986, %v2529, %v2528
        %v2531 = vrot.slane %v1958, 5
        %v2532 = vsel %vm1989, %v2531, %v2530
        %v2533 = vrot.slane %v1960, 4
        %v2534 = vsel %vm1992, %v2533, %v2532
        %v2535 = vrot.slane %v1962, 3
        %v2536 = vsel %vm1995, %v2535, %v2534
        %v2537 = vrot.slane %v1964, 2
        %v2538 = vsel %vm1998, %v2537, %v2536
        %v2539 = vrot.slane %v1966, 1
        %v2540 = vsel %vm2001, %v2539, %v2538
        %v2541 = vsel %vm2004, %v1968, %v2540
        %2542 = vrot.lane.b32.xlu0 %v2527, 120
        %v2543 = vpop.permute.xlu0 %2542
        %2544 = vrot.lane.b32.xlu0 %v2541, 120
        %v2545 = vpop.permute.xlu0 %2544
        %v2548 = vsel %vm1353, %v2005, %v2051
        %v2549 = vsel %vm1353, %v2019, %v2053
        %v2550 = vsel %vm1419, %v2548, %v2085
        %v2551 = vsel %vm1419, %v2549, %v2087
        %v2552 = vsel %vm1485, %v2550, %v2119
        %v2553 = vsel %vm1485, %v2551, %v2121
        %v2554 = vsel %vm1551, %v2552, %v2153
        %v2555 = vsel %vm1551, %v2553, %v2155
        %vm2556 = vcmask 326656
        %v2557 = vsel %vm2556, %v2554, %v2187
        %v2558 = vsel %vm2556, %v2555, %v2189
        %vm2559 = vcmask 392192
        %v2560 = vsel %vm2559, %v2557, %v2221
        %v2561 = vsel %vm2559, %v2558, %v2223
        %vm2562 = vcmask 457728
        %v2563 = vsel %vm2562, %v2560, %v2255
        %v2564 = vsel %vm2562, %v2561, %v2257
        %vm2565 = vcmask 523264
        %v2566 = vsel %vm2565, %v2563, %v2305
        %v2567 = vsel %vm2565, %v2564, %v2307
        %vm2568 = vcmask 588800
        %v2569 = vsel %vm2568, %v2566, %v2339
        %v2570 = vsel %vm2568, %v2567, %v2341
        %vm2571 = vcmask 654336
        %v2572 = vsel %vm2571, %v2569, %v2373
        %v2573 = vsel %vm2571, %v2570, %v2375
        %vm2574 = vcmask 719872
        %v2575 = vsel %vm2574, %v2572, %v2407
        %v2576 = vsel %vm2574, %v2573, %v2409
        %vm2577 = vcmask 785408
        %v2578 = vsel %vm2577, %v2575, %v2441
        %v2579 = vsel %vm2577, %v2576, %v2443
        %vm2580 = vcmask 850944
        %v2581 = vsel %vm2580, %v2578, %v2475
        %v2582 = vsel %vm2580, %v2579, %v2477
        %vm2583 = vcmask 916480
        %v2584 = vsel %vm2583, %v2581, %v2509
        %v2585 = vsel %vm2583, %v2582, %v2511
        %vm2586 = vcmask 982016
        %v2587 = vsel %vm2586, %v2584, %v2543
        %v2588 = vsel %vm2586, %v2585, %v2545
        %2589 = vst [vmem:[%s163] sm:$0xff] %v2587
        %2590 = vst [vmem:[%s163 + $0x8] sm:$0xff] %v2588
        %s2591 = sand.u32 %s93, 1
        %s2592 = scalar_lea.sflag [#allocation3], %s2591
        %s2593 = sand.u32 %s93, 1
        %s2594 = smul.addr %s2593, 16
        %s2595 = scalar_lea.vmem [#allocation2], %s2594
        // Predicated region
        $region33: #{tpu_custom_call.1} parent=31 // pred_check
          %p2596 = pneg %p103
        $region34: #{tpu_custom_call.1} parent=31 // pred_check_branch
          %2598 = sbr.rel (%p2596) target = $region36
        $region35: #{tpu_custom_call.1} parent=31 // pred_region
          %s2600 = ssub.s32 256, 256
          %2601 = vsyncadd %s2592, %s2600
          %s2602 = smul.addr %s17, 2
          %s2603 = smul.addr %s2602, 128
          %s2604 = scalar_lea.hbm %s3, %s2603
          %s2605 = sshll.u32 %s2595, 4
          %s2606 = int_to_ptr.vmem [resolvable:$true] %s2605
          %2611 = dma.vmem_to_hbm [thread:$0]  %s2606, 256, %s2604, %s2592, 128, 128, 8
        $region36: #{tpu_custom_call.1} parent=31 // pred_fallthru
          _
      $region32: #{tpu_custom_call.1} parent=5 // pred_fallthru
        _
      %p2612 = scmp.le.s32.totalorder 2, %s12
      // Predicated region
      $region37: #{tpu_custom_call.1} parent=5 // pred_check
        %p2613 = pneg %p2612
      $region38: #{tpu_custom_call.1} parent=5 // pred_check_branch
        %2615 = sbr.rel (%p2613) target = $region40
      $region39: #{tpu_custom_call.1} parent=5 // pred_region
        %s2616 = ssub.s32 %s12, 2
        // Predicated region
        $region41: #{tpu_custom_call.1} parent=39 // pred_check
          %p2617 = pneg %p109
        $region42: #{tpu_custom_call.1} parent=39 // pred_check_branch
          %2619 = sbr.rel (%p2617) target = $region44
        $region43: #{tpu_custom_call.1} parent=39 // pred_region
          %s2620 = sand.u32 %s94, 1
          %s2621 = scalar_lea.sflag [#allocation3], %s2620
          %s2622 = sand.u32 %s94, 1
          %s2623 = smul.addr %s2622, 16
          %s2624 = scalar_lea.vmem [#allocation2], %s2623
          %2625 = dma.done %s2621, 256
        $region44: #{tpu_custom_call.1} parent=39 // pred_fallthru
          _
      $region40: #{tpu_custom_call.1} parent=5 // pred_fallthru
        _
    $region6: #{tpu_custom_call.1} parent=1 // loop_footer
      %s16 = sadd.s32 1, %s12
    $region7: #{tpu_custom_call.1} parent=1 // loop_footer_branch
      %11 = sbr.rel target = $region3
    $region8: #{tpu_custom_call.1} parent=1 // loop_exit
      _
    %2626 = vsyncpa [#allocation3], 1
    %s2627 = scalar_lea.sflag [#allocation3], 1
    %2628 = vsyncpa %s2627, 1

</llo_original>
